<compile_context>
chip_gen: v5e
topology: v5e:2x2
jax: 0.10.0
libtpu: 0.0.40
codegen_flags: <defaults>
</compile_context>

<pallas_src>
import math
from functools import partial

import numpy as np
import jax
import jax.numpy as jnp
from jax.experimental import pallas as pl
from jax.experimental.pallas import tpu as pltpu


# ----------------------------------------------------------------------------
# helpers
# ----------------------------------------------------------------------------
def _round_up(x, m):
    return (x + m - 1) // m * m


def _vmem_capacity_bytes():
    try:
        return int(pltpu.get_tpu_info().vmem_capacity_bytes)
    except Exception:
        return 64 * 1024 * 1024  # conservative: v7x has 64 MiB per TensorCore


def _estimate_vmem(tile_n, tile_v, c, table_rows):
    resident = c * c * 2 + 3 * c * 4 + table_rows * c * 4      # W1 + b1/g/b + table
    per_step = (2 * tile_n * c * 2          # rep   (bf16, double-buffered)
                + 2 * tile_n * tile_v * 2   # dist  (bf16, double-buffered)
                + 2 * tile_n * 4            # position indices (int32)
                + 2 * tile_v * c * 2        # emb   (bf16, double-buffered)
                + 2 * 2 * tile_n * c * 4    # out + positions (f32, double-buffered)
                + tile_n * c * 4)           # f32 accumulator scratch
    return resident + per_step


def _pick_tiles(n_rows, v_pad_floor, c, table_rows):
    """Largest tiles whose double-buffered working set fits this chip's VMEM."""
    budget = int(_vmem_capacity_bytes() * 0.4)
    n_cap = _round_up(max(n_rows, 16), 16)
    for tv in (512, 256, 128):
        tile_v = min(tv, v_pad_floor)
        for tile_n in (1024, 512, 256, 128, 64, 32, 16):
            if tile_n > n_cap:
                continue
            if _estimate_vmem(tile_n, tile_v, c, table_rows) <= budget:
                return tile_n, tile_v
    return 16, min(128, v_pad_floor)


def sinusoidal_table(num_embeddings, embedding_dim, padding_idx):
    """fairseq SinusoidalPositionalEmbedding.get_embedding (even embedding_dim)."""
    half_dim = embedding_dim // 2
    emb = math.log(10000.0) / (half_dim - 1)
    emb = np.exp(np.arange(half_dim, dtype=np.float64) * -emb)
    emb = np.arange(num_embeddings, dtype=np.float64)[:, None] * emb[None, :]
    emb = np.concatenate([np.sin(emb), np.cos(emb)], axis=1)
    emb[padding_idx, :] = 0.0
    return jnp.asarray(emb, dtype=jnp.float32)


def make_positions(padding, padding_idx):
    """fairseq utils.make_positions applied to the (bool) padding mask."""
    mask = (~padding).astype(jnp.int32)
    return jnp.cumsum(mask, axis=1) * mask + padding_idx


# ----------------------------------------------------------------------------
# Pallas kernel
# ----------------------------------------------------------------------------
def adapter_kernel(rep_ref, dist_ref, idx_ref, w1_ref, b1_ref, g_ref, be_ref,
                   emb_ref, table_ref, out_ref, pos_ref, acc_ref, *, ln_eps):
    k = pl.program_id(1)
    nk = pl.num_programs(1)

    @pl.when(k == 0)
    def _init():
        acc_ref[...] = jnp.zeros_like(acc_ref)

    # Partial soft_out: (TILE_N, TILE_V) @ (TILE_V, C); bf16 MXU, f32 accumulate.
    # embed_scale is pre-folded into emb_ref.
    acc_ref[...] += jnp.dot(dist_ref[...], emb_ref[...],
                            preferred_element_type=jnp.float32)

    @pl.when(k == nk - 1)
    def _finalize():
        # linear_adapter: Linear -> LayerNorm -> Dropout(eval, identity) -> ReLU
        h = jnp.dot(rep_ref[...], w1_ref[...],
                    preferred_element_type=jnp.float32) + b1_ref[...]
        # one-pass LN statistics (var = E[x^2] - E[x]^2), single rsqrt
        mean = jnp.mean(h, axis=-1, keepdims=True)
        msq = jnp.mean(h * h, axis=-1, keepdims=True)
        inv = jax.lax.rsqrt(msq - mean * mean + ln_eps)
        # embed_scale pre-folded into gamma/beta (ReLU commutes with scale > 0)
        h = (h - mean) * inv * g_ref[...] + be_ref[...]
        linear_out = jnp.maximum(h, 0.0)

        # positions: one-hot matmul gather from the small resident table
        idx = idx_ref[...]                                        # (TILE_N, 1) i32
        rows = jax.lax.broadcasted_iota(
            jnp.int32, (idx.shape[0], table_ref.shape[0]), 1)
        onehot = (rows == idx).astype(jnp.float32)
        pos = jnp.dot(onehot, table_ref[...],
                      preferred_element_type=jnp.float32)

        pos_ref[...] = pos.astype(pos_ref.dtype)
        out_ref[...] = (linear_out + acc_ref[...] + pos).astype(out_ref.dtype)


# ----------------------------------------------------------------------------
# wrapper
# ----------------------------------------------------------------------------
def prepare_adapter_params(raw, *, padding_idx, max_source_positions,
                           no_scale_embedding=False, stream_dtype=jnp.bfloat16):
    """One-time parameter transform: fold embed_scale, cast matmul weights to
    bf16, build the (sublane-padded) sinusoidal positional table."""
    C = raw["w1"].shape[-1]
    embed_scale = 1.0 if no_scale_embedding else math.sqrt(C)

    num_emb = padding_idx + 1 + max_source_positions
    table = sinusoidal_table(num_emb, C, padding_idx)
    table_rows = _round_up(num_emb, 8)
    table = jnp.pad(table, ((0, table_rows - num_emb), (0, 0)))

    return {
        "w1": raw["w1"].astype(stream_dtype),                          # (C, C)
        "b1": raw["b1"].reshape(1, C).astype(jnp.float32),             # (1, C)
        "ln_g": (embed_scale * raw["ln_g"]).reshape(1, C).astype(jnp.float32),
        "ln_b": (embed_scale * raw["ln_b"]).reshape(1, C).astype(jnp.float32),
        "emb_w": (embed_scale * raw["emb_w"]).astype(stream_dtype),    # (V, C)
        "table": table,                                                # (rows, C) f32
    }


def adapter_forward(representation, distribution, padding, params, *,
                    padding_idx, tile_n=None, tile_v=None, ln_eps=1e-5,
                    stream_dtype=jnp.bfloat16):
    T, B, C = representation.shape
    V = distribution.shape[-1]
    N = T * B

    table = params["table"]
    table_rows = table.shape[0]

    # positional indices (fairseq utils.make_positions), flattened T-major
    pos_idx = make_positions(padding, padding_idx)                  # (B, T)
    idx = jnp.transpose(pos_idx).reshape(N, 1).astype(jnp.int32)    # (N, 1)

    # ---- tile selection (generation-aware) & padding ----
    v_pad_floor = _round_up(V, 128)
    auto_n, auto_v = _pick_tiles(N, v_pad_floor, C, table_rows)
    tile_n = tile_n or auto_n
    tile_v = tile_v or auto_v
    assert tile_n % 16 == 0 and tile_v % 128 == 0

    n_pad = _round_up(N, tile_n)
    v_pad = _round_up(V, tile_v)

    rep2 = jnp.pad(representation.reshape(N, C).astype(stream_dtype),
                   ((0, n_pad - N), (0, 0)))
    dist2 = jnp.pad(distribution.reshape(N, V).astype(stream_dtype),
                    ((0, n_pad - N), (0, v_pad - V)))
    idx = jnp.pad(idx, ((0, n_pad - N), (0, 0)), constant_values=padding_idx)
    emb = jnp.pad(params["emb_w"], ((0, v_pad - V), (0, 0)))

    grid = (n_pad // tile_n, v_pad // tile_v)

    vmem_limit = min(
        _vmem_capacity_bytes(),
        max(16 << 20,
            int(_estimate_vmem(tile_n, tile_v, C, table_rows) * 1.5) + (2 << 20)))

    kernel = partial(adapter_kernel, ln_eps=ln_eps)

    out2, pos2 = pl.pallas_call(
        kernel,
        out_shape=(jax.ShapeDtypeStruct((n_pad, C), jnp.float32),
                   jax.ShapeDtypeStruct((n_pad, C), jnp.float32)),
        grid_spec=pltpu.PrefetchScalarGridSpec(
            num_scalar_prefetch=0,
            grid=grid,
            in_specs=[
                pl.BlockSpec((tile_n, C), lambda i, k: (i, 0)),        # rep
                pl.BlockSpec((tile_n, tile_v), lambda i, k: (i, k)),   # dist
                pl.BlockSpec((tile_n, 1), lambda i, k: (i, 0)),        # pos idx
                pl.BlockSpec((C, C), lambda i, k: (0, 0)),             # W1 (resident)
                pl.BlockSpec((1, C), lambda i, k: (0, 0)),             # b1
                pl.BlockSpec((1, C), lambda i, k: (0, 0)),             # LN gamma*scale
                pl.BlockSpec((1, C), lambda i, k: (0, 0)),             # LN beta*scale
                pl.BlockSpec((tile_v, C), lambda i, k: (k, 0)),        # emb*scale
                pl.BlockSpec((table_rows, C), lambda i, k: (0, 0)),    # sin table
            ],
            out_specs=[
                pl.BlockSpec((tile_n, C), lambda i, k: (i, 0)),        # out
                pl.BlockSpec((tile_n, C), lambda i, k: (i, 0)),        # positions
            ],
            scratch_shapes=[pltpu.VMEM((tile_n, C), jnp.float32)],
        ),
        compiler_params=pltpu.CompilerParams(
            dimension_semantics=("parallel", "arbitrary"),
            vmem_limit_bytes=int(vmem_limit),
        ),
    )(rep2, dist2, idx, params["w1"], params["b1"], params["ln_g"],
      params["ln_b"], emb, table)

    out = out2[:N].reshape(T, B, C)
    positions = pos2[:N].reshape(T, B, C)
    return out, positions, padding


# ----------------------------------------------------------------------------
# pure-JAX reference (mirrors the PyTorch module, 'league', eval mode)
# ----------------------------------------------------------------------------
def reference_forward(representation, distribution, padding, raw, *,
                      padding_idx, max_source_positions, ln_eps=1e-5):
    T, B, C = representation.shape
    embed_scale = math.sqrt(C)
    hp = jax.lax.Precision.HIGHEST
    h = jnp.dot(representation, raw["w1"], precision=hp) + raw["b1"]
    mean = h.mean(-1, keepdims=True)
    var = ((h - mean) ** 2).mean(-1, keepdims=True)
    h = (h - mean) / jnp.sqrt(var + ln_eps) * raw["ln_g"] + raw["ln_b"]
    linear_out = jnp.maximum(h, 0.0)
    soft_out = jnp.dot(distribution, raw["emb_w"], precision=hp)
    out = embed_scale * (linear_out + soft_out)
    num_emb = padding_idx + 1 + max_source_positions
    table = sinusoidal_table(num_emb, C, padding_idx)
    positions = jnp.transpose(
        jnp.take(table, make_positions(padding, padding_idx), axis=0), (1, 0, 2))
    return positions + out, positions


# ----------------------------------------------------------------------------
# main
# ----------------------------------------------------------------------------
if __name__ == "__main__":
    # MXU-friendly toy sizes: C, V multiples of 128.
    B, T, C, V = 8, 16, 128, 256
    padding_idx = 1
    max_source_positions = 64

    key = jax.random.PRNGKey(0)
    k_rep, k_dist, k_w1, k_b1, k_emb = jax.random.split(key, 5)

    representation = jax.random.normal(k_rep, (T, B, C), dtype=jnp.float32)
    distribution = jax.nn.softmax(
        jax.random.normal(k_dist, (T, B, V), dtype=jnp.float32), axis=-1)
    padding = jnp.zeros((B, T), dtype=bool)
    padding = padding.at[1, T - 5:].set(True).at[3, T - 2:].set(True)

    raw_params = {
        "w1": 0.1 * jax.random.normal(k_w1, (C, C), dtype=jnp.float32),
        "b1": 0.01 * jax.random.normal(k_b1, (C,), dtype=jnp.float32),
        "ln_g": jnp.ones((C,), dtype=jnp.float32) + 0.05,
        "ln_b": 0.02 * jnp.ones((C,), dtype=jnp.float32),
        "emb_w": (0.05 * jax.random.normal(k_emb, (V, C), dtype=jnp.float32)
                  ).at[padding_idx].set(0.0),
    }

    params = prepare_adapter_params(
        raw_params, padding_idx=padding_idx,
        max_source_positions=max_source_positions)

    # tile_n=64, tile_v=128 -> grid (2, 2): exercises both the row tiling and
    # the vocab-reduction accumulator path at toy sizes.
    out, positions, pad_out = adapter_forward(
        representation, distribution, padding, params,
        padding_idx=padding_idx, tile_n=64, tile_v=128)
    jax.block_until_ready(out)

    assert out.shape == (T, B, C)
    assert positions.shape == (T, B, C)
    assert pad_out.shape == (B, T)

    # quantization-matched reference: identical bf16-rounded streams/weights,
    # f32 math -> isolates kernel correctness from bf16 input rounding.
    q = lambda x: x.astype(jnp.bfloat16).astype(jnp.float32)
    scale = math.sqrt(C)
    matched = dict(raw_params,
                   w1=q(raw_params["w1"]),
                   emb_w=q(scale * raw_params["emb_w"]) / scale)
    ref_q, ref_pos = reference_forward(
        q(representation), q(distribution), padding, matched,
        padding_idx=padding_idx, max_source_positions=max_source_positions)

    np.testing.assert_allclose(np.asarray(positions), np.asarray(ref_pos),
                               atol=6e-3, rtol=2e-3)
    np.testing.assert_allclose(np.asarray(out), np.asarray(ref_q),
                               atol=6e-3, rtol=2e-3)

    # loose sanity check vs the full-f32 PyTorch-faithful reference
    ref_f32, _ = reference_forward(
        representation, distribution, padding, raw_params,
        padding_idx=padding_idx, max_source_positions=max_source_positions)
    assert float(jnp.max(jnp.abs(out - ref_f32))) < 0.75

    print("KERNEL_OK")
</pallas_src>

<mosaic_0001>
module attributes {stable_mosaic.version = 11 : i64} {
  func.func @adapter_kernel(%arg0: i32, %arg1: i32, %arg2: memref<64x128xbf16, #tpu.memory_space<vmem>>, %arg3: memref<64x128xbf16, #tpu.memory_space<vmem>>, %arg4: memref<64x1xi32, #tpu.memory_space<vmem>>, %arg5: memref<128x128xbf16, #tpu.memory_space<vmem>>, %arg6: memref<1x128xf32, #tpu.memory_space<vmem>>, %arg7: memref<1x128xf32, #tpu.memory_space<vmem>>, %arg8: memref<1x128xf32, #tpu.memory_space<vmem>>, %arg9: memref<128x128xbf16, #tpu.memory_space<vmem>>, %arg10: memref<72x128xf32, #tpu.memory_space<vmem>>, %arg11: memref<64x128xf32, #tpu.memory_space<vmem>>, %arg12: memref<64x128xf32, #tpu.memory_space<vmem>>, %arg13: memref<64x128xf32, #tpu.memory_space<vmem>>) attributes {dimension_semantics = [#tpu.dimension_semantics<parallel>, #tpu.dimension_semantics<arbitrary>], iteration_bounds = array<i64: 2, 2>, scalar_prefetch = 0 : i64, scratch_operands = 1 : i64, tpu.core_type = #tpu.core_type<tc>, window_params = [{transform_indices = @transform_0, window_bounds = array<i64: 64, 128>}, {transform_indices = @transform_1, window_bounds = array<i64: 64, 128>}, {transform_indices = @transform_2, window_bounds = array<i64: 64, 1>}, {pipeline_mode = #tpu.pipeline_mode<synchronous>, transform_indices = @transform_3, window_bounds = array<i64: 128, 128>}, {pipeline_mode = #tpu.pipeline_mode<synchronous>, transform_indices = @transform_4, window_bounds = array<i64: 1, 128>}, {pipeline_mode = #tpu.pipeline_mode<synchronous>, transform_indices = @transform_5, window_bounds = array<i64: 1, 128>}, {pipeline_mode = #tpu.pipeline_mode<synchronous>, transform_indices = @transform_6, window_bounds = array<i64: 1, 128>}, {transform_indices = @transform_7, window_bounds = array<i64: 128, 128>}, {pipeline_mode = #tpu.pipeline_mode<synchronous>, transform_indices = @transform_8, window_bounds = array<i64: 72, 128>}, {transform_indices = @transform_9, window_bounds = array<i64: 64, 128>}, {transform_indices = @transform_10, window_bounds = array<i64: 64, 128>}]} {
    %c0_i32 = arith.constant 0 : i32
    %0 = arith.cmpi eq, %arg1, %c0_i32 : i32
    %1 = arith.extui %0 : i1 to i32
    %c0_i32_0 = arith.constant 0 : i32
    %2 = arith.cmpi ne, %1, %c0_i32_0 : i32
    scf.if %2 {
      %cst_9 = arith.constant 0.000000e+00 : f32
      %12 = vector.broadcast %cst_9 : f32 to vector<64x128xf32>
      %c0_10 = arith.constant 0 : index
      %c0_11 = arith.constant 0 : index
      %13 = vector.load %arg13[%c0_10, %c0_11] : memref<64x128xf32, #tpu.memory_space<vmem>>, vector<64x128xf32>
      tpu.vector_store %arg13[%c0_10, %c0_11], %12 {strides = array<i32>} : memref<64x128xf32, #tpu.memory_space<vmem>>, vector<64x128xf32>,
    } else {
    }
    %c0 = arith.constant 0 : index
    %c0_1 = arith.constant 0 : index
    %3 = vector.load %arg13[%c0, %c0_1] : memref<64x128xf32, #tpu.memory_space<vmem>>, vector<64x128xf32>
    %c0_2 = arith.constant 0 : index
    %c0_3 = arith.constant 0 : index
    %4 = vector.load %arg3[%c0_2, %c0_3] : memref<64x128xbf16, #tpu.memory_space<vmem>>, vector<64x128xbf16>
    %c0_4 = arith.constant 0 : index
    %c0_5 = arith.constant 0 : index
    %5 = vector.load %arg9[%c0_4, %c0_5] : memref<128x128xbf16, #tpu.memory_space<vmem>>, vector<128x128xbf16>
    %cst = arith.constant dense<0.000000e+00> : vector<64x128xf32>
    %6 = tpu.matmul %4, %5, %cst {dimension_numbers = #tpu.dot_dimension_numbers<[1], [0], [0], [1], [0, 0, 1, 1], [], []>} : vector<64x128xbf16>, vector<128x128xbf16>, vector<64x128xf32> -> vector<64x128xf32>
    %7 = arith.addf %3, %6 : vector<64x128xf32>
    %c0_6 = arith.constant 0 : index
    %c0_7 = arith.constant 0 : index
    %8 = vector.load %arg13[%c0_6, %c0_7] : memref<64x128xf32, #tpu.memory_space<vmem>>, vector<64x128xf32>
    tpu.vector_store %arg13[%c0_6, %c0_7], %7 {strides = array<i32>} : memref<64x128xf32, #tpu.memory_space<vmem>>, vector<64x128xf32>,
    %c1_i32 = arith.constant 1 : i32
    %9 = arith.cmpi eq, %arg1, %c1_i32 : i32
    %10 = arith.extui %9 : i1 to i32
    %c0_i32_8 = arith.constant 0 : i32
    %11 = arith.cmpi ne, %10, %c0_i32_8 : i32
    scf.if %11 {
      %c0_9 = arith.constant 0 : index
      %c0_10 = arith.constant 0 : index
      %12 = vector.load %arg2[%c0_9, %c0_10] : memref<64x128xbf16, #tpu.memory_space<vmem>>, vector<64x128xbf16>
      %c0_11 = arith.constant 0 : index
      %c0_12 = arith.constant 0 : index
      %13 = vector.load %arg5[%c0_11, %c0_12] : memref<128x128xbf16, #tpu.memory_space<vmem>>, vector<128x128xbf16>
      %cst_13 = arith.constant dense<0.000000e+00> : vector<64x128xf32>
      %14 = tpu.matmul %12, %13, %cst_13 {dimension_numbers = #tpu.dot_dimension_numbers<[1], [0], [0], [1], [0, 0, 1, 1], [], []>} : vector<64x128xbf16>, vector<128x128xbf16>, vector<64x128xf32> -> vector<64x128xf32>
      %c0_14 = arith.constant 0 : index
      %c0_15 = arith.constant 0 : index
      %15 = vector.load %arg6[%c0_14, %c0_15] : memref<1x128xf32, #tpu.memory_space<vmem>>, vector<1x128xf32>
      %16 = vector.broadcast %15 : vector<1x128xf32> to vector<64x128xf32>
      %17 = arith.addf %14, %16 : vector<64x128xf32>
      %cst_16 = arith.constant dense<0.000000e+00> : vector<64xf32>
      %18 = vector.multi_reduction <add>, %17, %cst_16 [1] : vector<64x128xf32> to vector<64xf32>
      %19 = vector.shape_cast %18 : vector<64xf32> to vector<64x1xf32>
      %cst_17 = arith.constant 1.280000e+02 : f32
      %20 = vector.broadcast %cst_17 : f32 to vector<64x1xf32>
      %21 = arith.divf %19, %20 : vector<64x1xf32>
      %22 = arith.mulf %17, %17 : vector<64x128xf32>
      %cst_18 = arith.constant dense<0.000000e+00> : vector<64xf32>
      %23 = vector.multi_reduction <add>, %22, %cst_18 [1] : vector<64x128xf32> to vector<64xf32>
      %24 = vector.shape_cast %23 : vector<64xf32> to vector<64x1xf32>
      %cst_19 = arith.constant 1.280000e+02 : f32
      %25 = vector.broadcast %cst_19 : f32 to vector<64x1xf32>
      %26 = arith.divf %24, %25 : vector<64x1xf32>
      %27 = arith.mulf %21, %21 : vector<64x1xf32>
      %28 = arith.subf %26, %27 : vector<64x1xf32>
      %cst_20 = arith.constant 9.99999974E-6 : f32
      %29 = vector.broadcast %cst_20 : f32 to vector<64x1xf32>
      %30 = arith.addf %28, %29 : vector<64x1xf32>
      %31 = math.rsqrt %30 : vector<64x1xf32>
      %32 = vector.broadcast %21 : vector<64x1xf32> to vector<64x128xf32>
      %33 = arith.subf %17, %32 : vector<64x128xf32>
      %34 = vector.broadcast %31 : vector<64x1xf32> to vector<64x128xf32>
      %35 = arith.mulf %33, %34 : vector<64x128xf32>
      %c0_21 = arith.constant 0 : index
      %c0_22 = arith.constant 0 : index
      %36 = vector.load %arg7[%c0_21, %c0_22] : memref<1x128xf32, #tpu.memory_space<vmem>>, vector<1x128xf32>
      %37 = vector.broadcast %36 : vector<1x128xf32> to vector<64x128xf32>
      %38 = arith.mulf %35, %37 : vector<64x128xf32>
      %c0_23 = arith.constant 0 : index
      %c0_24 = arith.constant 0 : index
      %39 = vector.load %arg8[%c0_23, %c0_24] : memref<1x128xf32, #tpu.memory_space<vmem>>, vector<1x128xf32>
      %40 = vector.broadcast %39 : vector<1x128xf32> to vector<64x128xf32>
      %41 = arith.addf %38, %40 : vector<64x128xf32>
      %cst_25 = arith.constant 0.000000e+00 : f32
      %42 = vector.broadcast %cst_25 : f32 to vector<64x128xf32>
      %43 = arith.maximumf %41, %42 : vector<64x128xf32>
      %c0_26 = arith.constant 0 : index
      %c0_27 = arith.constant 0 : index
      %44 = vector.load %arg4[%c0_26, %c0_27] : memref<64x1xi32, #tpu.memory_space<vmem>>, vector<64x1xi32>
      %45 = tpu.iota {dimensions = array<i32: 1>} : vector<64x72xi32>
      %46 = vector.broadcast %44 : vector<64x1xi32> to vector<64x72xi32>
      %47 = arith.cmpi eq, %45, %46 : vector<64x72xi32>
      %48 = arith.extui %47 : vector<64x72xi1> to vector<64x72xi32>
      %49 = arith.sitofp %48 : vector<64x72xi32> to vector<64x72xf32>
      %c0_28 = arith.constant 0 : index
      %c0_29 = arith.constant 0 : index
      %50 = vector.load %arg10[%c0_28, %c0_29] : memref<72x128xf32, #tpu.memory_space<vmem>>, vector<72x128xf32>
      %cst_30 = arith.constant dense<0.000000e+00> : vector<64x128xf32>
      %51 = tpu.matmul %49, %50, %cst_30 {dimension_numbers = #tpu.dot_dimension_numbers<[1], [0], [0], [1], [0, 0, 1, 1], [], []>} : vector<64x72xf32>, vector<72x128xf32>, vector<64x128xf32> -> vector<64x128xf32>
      %c0_31 = arith.constant 0 : index
      %c0_32 = arith.constant 0 : index
      %52 = vector.load %arg12[%c0_31, %c0_32] : memref<64x128xf32, #tpu.memory_space<vmem>>, vector<64x128xf32>
      tpu.vector_store %arg12[%c0_31, %c0_32], %51 {strides = array<i32>} : memref<64x128xf32, #tpu.memory_space<vmem>>, vector<64x128xf32>,
      %c0_33 = arith.constant 0 : index
      %c0_34 = arith.constant 0 : index
      %53 = vector.load %arg13[%c0_33, %c0_34] : memref<64x128xf32, #tpu.memory_space<vmem>>, vector<64x128xf32>
      %54 = arith.addf %43, %53 : vector<64x128xf32>
      %55 = arith.addf %54, %51 : vector<64x128xf32>
      %c0_35 = arith.constant 0 : index
      %c0_36 = arith.constant 0 : index
      %56 = vector.load %arg11[%c0_35, %c0_36] : memref<64x128xf32, #tpu.memory_space<vmem>>, vector<64x128xf32>
      tpu.vector_store %arg11[%c0_35, %c0_36], %55 {strides = array<i32>} : memref<64x128xf32, #tpu.memory_space<vmem>>, vector<64x128xf32>,
    } else {
    }
    return
  }
  func.func @transform_0(%arg0: i32, %arg1: i32) -> (i32, i32) {
    %c0_i32 = arith.constant 0 : i32
    %c0_i32_0 = arith.constant 0 : i32
    return %arg0, %c0_i32 : i32, i32
  }
  func.func @transform_1(%arg0: i32, %arg1: i32) -> (i32, i32) {
    %c0_i32 = arith.constant 0 : i32
    return %arg0, %arg1 : i32, i32
  }
  func.func @transform_2(%arg0: i32, %arg1: i32) -> (i32, i32) {
    %c0_i32 = arith.constant 0 : i32
    %c0_i32_0 = arith.constant 0 : i32
    return %arg0, %c0_i32 : i32, i32
  }
  func.func @transform_3(%arg0: i32, %arg1: i32) -> (i32, i32) {
    %c0_i32 = arith.constant 0 : i32
    %c0_i32_0 = arith.constant 0 : i32
    %c0_i32_1 = arith.constant 0 : i32
    return %c0_i32, %c0_i32_0 : i32, i32
  }
  func.func @transform_4(%arg0: i32, %arg1: i32) -> (i32, i32) {
    %c0_i32 = arith.constant 0 : i32
    %c0_i32_0 = arith.constant 0 : i32
    %c0_i32_1 = arith.constant 0 : i32
    return %c0_i32, %c0_i32_0 : i32, i32
  }
  func.func @transform_5(%arg0: i32, %arg1: i32) -> (i32, i32) {
    %c0_i32 = arith.constant 0 : i32
    %c0_i32_0 = arith.constant 0 : i32
    %c0_i32_1 = arith.constant 0 : i32
    return %c0_i32, %c0_i32_0 : i32, i32
  }
  func.func @transform_6(%arg0: i32, %arg1: i32) -> (i32, i32) {
    %c0_i32 = arith.constant 0 : i32
    %c0_i32_0 = arith.constant 0 : i32
    %c0_i32_1 = arith.constant 0 : i32
    return %c0_i32, %c0_i32_0 : i32, i32
  }
  func.func @transform_7(%arg0: i32, %arg1: i32) -> (i32, i32) {
    %c0_i32 = arith.constant 0 : i32
    %c0_i32_0 = arith.constant 0 : i32
    return %arg1, %c0_i32 : i32, i32
  }
  func.func @transform_8(%arg0: i32, %arg1: i32) -> (i32, i32) {
    %c0_i32 = arith.constant 0 : i32
    %c0_i32_0 = arith.constant 0 : i32
    %c0_i32_1 = arith.constant 0 : i32
    return %c0_i32, %c0_i32_0 : i32, i32
  }
  func.func @transform_9(%arg0: i32, %arg1: i32) -> (i32, i32) {
    %c0_i32 = arith.constant 0 : i32
    %c0_i32_0 = arith.constant 0 : i32
    return %arg0, %c0_i32 : i32, i32
  }
  func.func @transform_10(%arg0: i32, %arg1: i32) -> (i32, i32) {
    %c0_i32 = arith.constant 0 : i32
    %c0_i32_0 = arith.constant 0 : i32
    return %arg0, %c0_i32 : i32, i32
  }
}

</mosaic_0001>

<llo_original>
// kernel: tpu_custom_call.1
$region0: #{tpu_custom_call.1}
  #allocation0 [shape = 'u32[]', space=smem, size = 0x4, offset = 0x4, fixed_abs, tag = 'smem constant byte address 0x4 - core index']
  #allocation1 [shape = 'u32[72,128]{1,0:T(1,128)}', space=vmem, size = 0x9000, scoped, tag = 'internal scratch']
  #allocation2 [shape = 'f32[64,128]{1,0:T(8,128)}', space=vmem, size = 0x8000, scoped, tag = 'scratch operand']
  %s0 = inlined_call_operand.hbm [shape: bf16[128,128], index: 0, kind: input, shape index: {}]
  %s1 = inlined_call_operand.vmem [shape: bf16[128,256], index: 1, kind: input, shape index: {}]
  %s2 = inlined_call_operand.vmem [shape: s32[128,1], index: 2, kind: input, shape index: {}]
  %s3 = inlined_call_operand.hbm [shape: bf16[128,128], index: 3, kind: input, shape index: {}]
  %s4 = inlined_call_operand.vmem [shape: f32[1,128], index: 4, kind: input, shape index: {}]
  %s5 = inlined_call_operand.vmem [shape: f32[1,128], index: 5, kind: input, shape index: {}]
  %s6 = inlined_call_operand.vmem [shape: f32[1,128], index: 6, kind: input, shape index: {}]
  %s7 = inlined_call_operand.hbm [shape: bf16[256,128], index: 7, kind: input, shape index: {}]
  %s8 = inlined_call_operand.hbm [shape: f32[72,128], index: 8, kind: input, shape index: {}]
  %s9 = inlined_call_operand.hbm [shape: f32[128,128], index: 9, kind: output, shape index: {0}]
  %s10 = inlined_call_operand.hbm [shape: f32[128,128], index: 10, kind: output, shape index: {1}]
  %11 = xla_tuple %s9, %s10
  %s12 = sld [smem:[#allocation0]]
  $region142: #{tpu_custom_call.1} parent=0
    _
  %s14 = ssub.s32 1, %s12
  %s15 = scalar_select 0, %s14, %s12
  $region1: #{tpu_custom_call.1} parent=0
    #allocation3 [shape = 'u8[32768]{0}', space=vmem, size = 0x8000, scoped, tag = 'input window, operand 0']
    #allocation4 [shape = 's32[2]{0}', space=sflag, size = 0x8, scoped, tag = 'scoped memory for tpu_custom_call.1']
    #allocation5 [shape = 's32[2]{0}', space=sflag, size = 0x8, scoped, tag = 'scoped memory for tpu_custom_call.1']
    #allocation6 [shape = 'u8[32768]{0}', space=vmem, size = 0x8000, scoped, tag = 'input window, operand 1']
    #allocation7 [shape = 'u8[32768]{0}', space=vmem, size = 0x8000, scoped, tag = 'input window, operand 3, single buffered']
    #allocation8 [shape = 's32[1]{0}', space=sflag, size = 0x4, scoped, tag = 'scoped memory for tpu_custom_call.1']
    #allocation9 [shape = 'u8[65536]{0}', space=vmem, size = 0x10000, scoped, tag = 'input window, operand 7']
    #allocation10 [shape = 'u8[36864]{0}', space=vmem, size = 0x9000, scoped, tag = 'input window, operand 8, single buffered']
    #allocation11 [shape = 'u8[65536]{0}', space=vmem, size = 0x10000, scoped, tag = 'output window, operand 0']
    #allocation12 [shape = 'u8[65536]{0}', space=vmem, size = 0x10000, scoped, tag = 'output window, operand 1']
    #allocation13 [shape = 's32[2]{0}', space=sflag, size = 0x8, scoped, tag = 'scoped memory for tpu_custom_call.1']
    %16 = vsyncpa [#allocation4], 0
    %s17 = scalar_lea.sflag [#allocation4], 1
    %18 = vsyncpa %s17, 0
    %19 = vsyncpa [#allocation8], 0
    %20 = vsyncpa [#allocation5], 0
    %s21 = scalar_lea.sflag [#allocation5], 1
    %22 = vsyncpa %s21, 0
    %23 = vsyncpa [#allocation13], 0
    %s24 = scalar_lea.sflag [#allocation13], 1
    %25 = vsyncpa %s24, 0
    loop: start=0, step=1, limit=6
    $region2: #{tpu_custom_call.1} parent=1 // loop_pre_header
      _
    $region3: #{tpu_custom_call.1} parent=1 // loop_header
      %s27 = sphi 0, %s31
      %p28 = scmp.ge.s32.totalorder %s27, 6
      %s34 = sphi 0, %s46
      %s35 = sphi 0, %s42
      %s36 = sphi 0, %s34
      %s37 = sphi 0, %s35
      %s38 = sphi 0, %s36
      %s39 = sphi 0, %s37
      %s49 = sphi 0, %s51
      %s52 = sphi 0, %s49
      %s53 = sphi 0, %s52
      %s69 = sphi 0, %s53
      %s77 = sphi 0, %s79
      %s80 = sphi 0, %s77
      %s81 = sphi 0, %s80
      %s97 = sphi 0, %s81
      %s103 = sphi 0, %s105
      %s106 = sphi 0, %s103
      %s107 = sphi 0, %s106
      %s123 = sphi 0, %s107
      %s127 = sphi 0, %s127
      %s129 = sphi 0, %s127
      %s130 = sphi 0, %s129
      %s144 = sphi 0, %s130
      %s148 = sphi 0, %s148
      %s150 = sphi 0, %s148
      %s151 = sphi 0, %s150
      %s165 = sphi 0, %s151
      %s169 = sphi 0, %s169
      %s171 = sphi 0, %s169
      %s172 = sphi 0, %s171
      %s186 = sphi 0, %s172
      %s190 = sphi 0, %s190
      %s192 = sphi 0, %s190
      %s193 = sphi 0, %s192
      %s207 = sphi 0, %s193
      %s213 = sphi 0, %s215
      %s216 = sphi 0, %s213
      %s217 = sphi 0, %s216
      %s233 = sphi 0, %s217
      %s237 = sphi 0, %s237
      %s239 = sphi 0, %s237
      %s240 = sphi 0, %s239
      %s254 = sphi 0, %s240
      %s260 = sphi 0, %s262
      %s263 = sphi 0, %s260
      %s264 = sphi 0, %s263
      %s280 = sphi 0, %s264
      %s286 = sphi 0, %s288
      %s289 = sphi 0, %s286
      %s290 = sphi 0, %s289
      %s306 = sphi 0, %s290
    $region4: #{tpu_custom_call.1} parent=1 // loop_header_branch
      %30 = sbr.rel (%p28) target = $region8
    $region5: #{tpu_custom_call.1} parent=1 // loop_body
      %s32 = ssub.s32 %s27, 1
      %s33 = ssub.s32 %s27, 2
      %s40 = sadd.s32 1, %s35
      %p41 = scmp.ge.s32.totalorder %s40, 2
      %s42 = scalar_select %p41, 0, %s40
      %s43 = sadd.s32 1, %s34
      %s44 = scalar_select %p41, %s43, %s34
      %p45 = scmp.ge.s32.totalorder %s44, 2
      %s46 = scalar_select %p45, 0, %s44
      %s47 = ssub.s32 %s34, %s46
      %p48 = scmp.eq.s32.totalorder %s47, 0
      %s50 = sadd.s32 %s49, 1
      %s51 = scalar_select %p48, %s49, %s50
      %p54 = pneg %p48
      %p55 = scmp.eq.s32.totalorder %s27, 3
      %p56 = por %p54, %p55
      %p57 = scmp.ne.s32.totalorder %s49, %s52
      %p58 = scmp.eq.s32.totalorder %s27, 0
      %p59 = por %p57, %p58
      %p60 = scmp.ne.s32.totalorder %s49, %s52
      %p61 = scmp.eq.s32.totalorder %s32, 3
      %p62 = por %p60, %p61
      %p63 = scmp.ne.s32.totalorder %s52, %s53
      %p64 = scmp.eq.s32.totalorder %s32, 0
      %p65 = por %p63, %p64
      %p66 = scmp.ne.s32.totalorder %s52, %s53
      %p67 = scmp.eq.s32.totalorder %s33, 3
      %p68 = por %p66, %p67
      %p70 = scmp.ne.s32.totalorder %s53, %s69
      %p71 = scmp.eq.s32.totalorder %s33, 0
      %p72 = por %p70, %p71
      %s73 = ssub.s32 %s34, %s46
      %s74 = ssub.s32 %s35, %s42
      %s75 = sor.u32 %s73, %s74
      %p76 = scmp.eq.s32.totalorder %s75, 0
      %s78 = sadd.s32 %s77, 1
      %s79 = scalar_select %p76, %s77, %s78
      %p82 = pneg %p76
      %p83 = scmp.eq.s32.totalorder %s27, 3
      %p84 = por %p82, %p83
      %p85 = scmp.ne.s32.totalorder %s77, %s80
      %p86 = scmp.eq.s32.totalorder %s27, 0
      %p87 = por %p85, %p86
      %p88 = scmp.ne.s32.totalorder %s77, %s80
      %p89 = scmp.eq.s32.totalorder %s32, 3
      %p90 = por %p88, %p89
      %p91 = scmp.ne.s32.totalorder %s80, %s81
      %p92 = scmp.eq.s32.totalorder %s32, 0
      %p93 = por %p91, %p92
      %p94 = scmp.ne.s32.totalorder %s80, %s81
      %p95 = scmp.eq.s32.totalorder %s33, 3
      %p96 = por %p94, %p95
      %p98 = scmp.ne.s32.totalorder %s81, %s97
      %p99 = scmp.eq.s32.totalorder %s33, 0
      %p100 = por %p98, %p99
      %s101 = ssub.s32 %s34, %s46
      %p102 = scmp.eq.s32.totalorder %s101, 0
      %s104 = sadd.s32 %s103, 1
      %s105 = scalar_select %p102, %s103, %s104
      %p108 = pneg %p102
      %p109 = scmp.eq.s32.totalorder %s27, 3
      %p110 = por %p108, %p109
      %p111 = scmp.ne.s32.totalorder %s103, %s106
      %p112 = scmp.eq.s32.totalorder %s27, 0
      %p113 = por %p111, %p112
      %p114 = scmp.ne.s32.totalorder %s103, %s106
      %p115 = scmp.eq.s32.totalorder %s32, 3
      %p116 = por %p114, %p115
      %p117 = scmp.ne.s32.totalorder %s106, %s107
      %p118 = scmp.eq.s32.totalorder %s32, 0
      %p119 = por %p117, %p118
      %p120 = scmp.ne.s32.totalorder %s106, %s107
      %p121 = scmp.eq.s32.totalorder %s33, 3
      %p122 = por %p120, %p121
      %p124 = scmp.ne.s32.totalorder %s107, %s123
      %p125 = scmp.eq.s32.totalorder %s33, 0
      %p126 = por %p124, %p125
      %s128 = sadd.s32 %s127, 1
      %p131 = scmp.eq.s32.totalorder %s27, 3
      %p132 = scmp.ne.s32.totalorder %s127, %s129
      %p133 = scmp.eq.s32.totalorder %s27, 0
      %p134 = por %p132, %p133
      %p135 = scmp.ne.s32.totalorder %s127, %s129
      %p136 = scmp.eq.s32.totalorder %s32, 3
      %p137 = por %p135, %p136
      %p138 = scmp.ne.s32.totalorder %s129, %s130
      %p139 = scmp.eq.s32.totalorder %s32, 0
      %p140 = por %p138, %p139
      %p141 = scmp.ne.s32.totalorder %s129, %s130
      %p142 = scmp.eq.s32.totalorder %s33, 3
      %p143 = por %p141, %p142
      %p145 = scmp.ne.s32.totalorder %s130, %s144
      %p146 = scmp.eq.s32.totalorder %s33, 0
      %p147 = por %p145, %p146
      %s149 = sadd.s32 %s148, 1
      %p152 = scmp.eq.s32.totalorder %s27, 3
      %p153 = scmp.ne.s32.totalorder %s148, %s150
      %p154 = scmp.eq.s32.totalorder %s27, 0
      %p155 = por %p153, %p154
      %p156 = scmp.ne.s32.totalorder %s148, %s150
      %p157 = scmp.eq.s32.totalorder %s32, 3
      %p158 = por %p156, %p157
      %p159 = scmp.ne.s32.totalorder %s150, %s151
      %p160 = scmp.eq.s32.totalorder %s32, 0
      %p161 = por %p159, %p160
      %p162 = scmp.ne.s32.totalorder %s150, %s151
      %p163 = scmp.eq.s32.totalorder %s33, 3
      %p164 = por %p162, %p163
      %p166 = scmp.ne.s32.totalorder %s151, %s165
      %p167 = scmp.eq.s32.totalorder %s33, 0
      %p168 = por %p166, %p167
      %s170 = sadd.s32 %s169, 1
      %p173 = scmp.eq.s32.totalorder %s27, 3
      %p174 = scmp.ne.s32.totalorder %s169, %s171
      %p175 = scmp.eq.s32.totalorder %s27, 0
      %p176 = por %p174, %p175
      %p177 = scmp.ne.s32.totalorder %s169, %s171
      %p178 = scmp.eq.s32.totalorder %s32, 3
      %p179 = por %p177, %p178
      %p180 = scmp.ne.s32.totalorder %s171, %s172
      %p181 = scmp.eq.s32.totalorder %s32, 0
      %p182 = por %p180, %p181
      %p183 = scmp.ne.s32.totalorder %s171, %s172
      %p184 = scmp.eq.s32.totalorder %s33, 3
      %p185 = por %p183, %p184
      %p187 = scmp.ne.s32.totalorder %s172, %s186
      %p188 = scmp.eq.s32.totalorder %s33, 0
      %p189 = por %p187, %p188
      %s191 = sadd.s32 %s190, 1
      %p194 = scmp.eq.s32.totalorder %s27, 3
      %p195 = scmp.ne.s32.totalorder %s190, %s192
      %p196 = scmp.eq.s32.totalorder %s27, 0
      %p197 = por %p195, %p196
      %p198 = scmp.ne.s32.totalorder %s190, %s192
      %p199 = scmp.eq.s32.totalorder %s32, 3
      %p200 = por %p198, %p199
      %p201 = scmp.ne.s32.totalorder %s192, %s193
      %p202 = scmp.eq.s32.totalorder %s32, 0
      %p203 = por %p201, %p202
      %p204 = scmp.ne.s32.totalorder %s192, %s193
      %p205 = scmp.eq.s32.totalorder %s33, 3
      %p206 = por %p204, %p205
      %p208 = scmp.ne.s32.totalorder %s193, %s207
      %p209 = scmp.eq.s32.totalorder %s33, 0
      %p210 = por %p208, %p209
      %s211 = ssub.s32 %s35, %s42
      %p212 = scmp.eq.s32.totalorder %s211, 0
      %s214 = sadd.s32 %s213, 1
      %s215 = scalar_select %p212, %s213, %s214
      %p218 = pneg %p212
      %p219 = scmp.eq.s32.totalorder %s27, 3
      %p220 = por %p218, %p219
      %p221 = scmp.ne.s32.totalorder %s213, %s216
      %p222 = scmp.eq.s32.totalorder %s27, 0
      %p223 = por %p221, %p222
      %p224 = scmp.ne.s32.totalorder %s213, %s216
      %p225 = scmp.eq.s32.totalorder %s32, 3
      %p226 = por %p224, %p225
      %p227 = scmp.ne.s32.totalorder %s216, %s217
      %p228 = scmp.eq.s32.totalorder %s32, 0
      %p229 = por %p227, %p228
      %p230 = scmp.ne.s32.totalorder %s216, %s217
      %p231 = scmp.eq.s32.totalorder %s33, 3
      %p232 = por %p230, %p231
      %p234 = scmp.ne.s32.totalorder %s217, %s233
      %p235 = scmp.eq.s32.totalorder %s33, 0
      %p236 = por %p234, %p235
      %s238 = sadd.s32 %s237, 1
      %p241 = scmp.eq.s32.totalorder %s27, 3
      %p242 = scmp.ne.s32.totalorder %s237, %s239
      %p243 = scmp.eq.s32.totalorder %s27, 0
      %p244 = por %p242, %p243
      %p245 = scmp.ne.s32.totalorder %s237, %s239
      %p246 = scmp.eq.s32.totalorder %s32, 3
      %p247 = por %p245, %p246
      %p248 = scmp.ne.s32.totalorder %s239, %s240
      %p249 = scmp.eq.s32.totalorder %s32, 0
      %p250 = por %p248, %p249
      %p251 = scmp.ne.s32.totalorder %s239, %s240
      %p252 = scmp.eq.s32.totalorder %s33, 3
      %p253 = por %p251, %p252
      %p255 = scmp.ne.s32.totalorder %s240, %s254
      %p256 = scmp.eq.s32.totalorder %s33, 0
      %p257 = por %p255, %p256
      %s258 = ssub.s32 %s34, %s46
      %p259 = scmp.eq.s32.totalorder %s258, 0
      %s261 = sadd.s32 %s260, 1
      %s262 = scalar_select %p259, %s260, %s261
      %p265 = pneg %p259
      %p266 = scmp.eq.s32.totalorder %s27, 3
      %p267 = por %p265, %p266
      %p268 = scmp.ne.s32.totalorder %s260, %s263
      %p269 = scmp.eq.s32.totalorder %s27, 0
      %p270 = por %p268, %p269
      %p271 = scmp.ne.s32.totalorder %s260, %s263
      %p272 = scmp.eq.s32.totalorder %s32, 3
      %p273 = por %p271, %p272
      %p274 = scmp.ne.s32.totalorder %s263, %s264
      %p275 = scmp.eq.s32.totalorder %s32, 0
      %p276 = por %p274, %p275
      %p277 = scmp.ne.s32.totalorder %s263, %s264
      %p278 = scmp.eq.s32.totalorder %s33, 3
      %p279 = por %p277, %p278
      %p281 = scmp.ne.s32.totalorder %s264, %s280
      %p282 = scmp.eq.s32.totalorder %s33, 0
      %p283 = por %p281, %p282
      %s284 = ssub.s32 %s34, %s46
      %p285 = scmp.eq.s32.totalorder %s284, 0
      %s287 = sadd.s32 %s286, 1
      %s288 = scalar_select %p285, %s286, %s287
      %p291 = pneg %p285
      %p292 = scmp.eq.s32.totalorder %s27, 3
      %p293 = por %p291, %p292
      %p294 = scmp.ne.s32.totalorder %s286, %s289
      %p295 = scmp.eq.s32.totalorder %s27, 0
      %p296 = por %p294, %p295
      %p297 = scmp.ne.s32.totalorder %s286, %s289
      %p298 = scmp.eq.s32.totalorder %s32, 3
      %p299 = por %p297, %p298
      %p300 = scmp.ne.s32.totalorder %s289, %s290
      %p301 = scmp.eq.s32.totalorder %s32, 0
      %p302 = por %p300, %p301
      %p303 = scmp.ne.s32.totalorder %s289, %s290
      %p304 = scmp.eq.s32.totalorder %s33, 3
      %p305 = por %p303, %p304
      %p307 = scmp.ne.s32.totalorder %s290, %s306
      %p308 = scmp.eq.s32.totalorder %s33, 0
      %p309 = por %p307, %p308
      %p310 = scmp.le.s32.totalorder 1, %s27
      %p311 = scmp.lt.s32.totalorder %s27, 5
      %p312 = pnand %p310, %p311
      %p313 = pneg %p312
      // Predicated region
      $region9: #{tpu_custom_call.1} parent=5 // pred_check
        _
      $region10: #{tpu_custom_call.1} parent=5 // pred_check_branch
        %315 = sbr.rel (%p312) target = $region12
      $region11: #{tpu_custom_call.1} parent=5 // pred_region
        %s316 = ssub.s32 %s27, 1
        // Predicated region
        $region13: #{tpu_custom_call.1} parent=11 // pred_check
          %p317 = pneg %p140
        $region14: #{tpu_custom_call.1} parent=11 // pred_check_branch
          %319 = sbr.rel (%p317) target = $region16
        $region15: #{tpu_custom_call.1} parent=11 // pred_region
          %321 = vsyncadd [#allocation8], 0
          %s322 = sshll.u32 %s3, 4
          %s323 = int_to_ptr.hbm [resolvable:$true] %s322
          %s324 = sshll.u32 [#allocation7], 4
          %s325 = int_to_ptr.vmem [resolvable:$true] %s324
          %330 = dma.hbm_to_vmem [thread:$0]  %s323, 1024, %s325, [#allocation8], 64, 64, 4
        $region16: #{tpu_custom_call.1} parent=11 // pred_fallthru
          _
        // Predicated region
        $region17: #{tpu_custom_call.1} parent=11 // pred_check
          %p331 = pneg %p161
        $region18: #{tpu_custom_call.1} parent=11 // pred_check_branch
          %333 = sbr.rel (%p331) target = $region20
        $region19: #{tpu_custom_call.1} parent=11 // pred_region
          _
        $region20: #{tpu_custom_call.1} parent=11 // pred_fallthru
          _
        // Predicated region
        $region21: #{tpu_custom_call.1} parent=11 // pred_check
          %p334 = pneg %p182
        $region22: #{tpu_custom_call.1} parent=11 // pred_check_branch
          %336 = sbr.rel (%p334) target = $region24
        $region23: #{tpu_custom_call.1} parent=11 // pred_region
          _
        $region24: #{tpu_custom_call.1} parent=11 // pred_fallthru
          _
        // Predicated region
        $region25: #{tpu_custom_call.1} parent=11 // pred_check
          %p337 = pneg %p203
        $region26: #{tpu_custom_call.1} parent=11 // pred_check_branch
          %339 = sbr.rel (%p337) target = $region28
        $region27: #{tpu_custom_call.1} parent=11 // pred_region
          _
        $region28: #{tpu_custom_call.1} parent=11 // pred_fallthru
          _
        // Predicated region
        $region29: #{tpu_custom_call.1} parent=11 // pred_check
          %p340 = pneg %p250
        $region30: #{tpu_custom_call.1} parent=11 // pred_check_branch
          %342 = sbr.rel (%p340) target = $region32
        $region31: #{tpu_custom_call.1} parent=11 // pred_region
          %344 = vsyncadd [#allocation8], 0
          %s345 = sshll.u32 %s8, 4
          %s346 = int_to_ptr.hbm [resolvable:$true] %s345
          %s347 = sshll.u32 [#allocation10], 4
          %s348 = int_to_ptr.vmem [resolvable:$true] %s347
          %353 = dma.hbm_to_vmem [thread:$0]  %s346, 1152, %s348, [#allocation8], 128, 128, 8
        $region32: #{tpu_custom_call.1} parent=11 // pred_fallthru
          _
      $region12: #{tpu_custom_call.1} parent=5 // pred_fallthru
        _
      %p354 = scmp.lt.s32.totalorder %s27, 4
      // Predicated region
      $region33: #{tpu_custom_call.1} parent=5 // pred_check
        %p355 = pneg %p354
      $region34: #{tpu_custom_call.1} parent=5 // pred_check_branch
        %357 = sbr.rel (%p355) target = $region36
      $region35: #{tpu_custom_call.1} parent=5 // pred_region
        // Predicated region
        $region37: #{tpu_custom_call.1} parent=35 // pred_check
          %p358 = pneg %p59
        $region38: #{tpu_custom_call.1} parent=35 // pred_check_branch
          %360 = sbr.rel (%p358) target = $region40
        $region39: #{tpu_custom_call.1} parent=35 // pred_region
          %s361 = sand.u32 %s27, 1
          %s362 = scalar_lea.sflag [#allocation4], %s361
          %s363 = sand.u32 %s49, 1
          %s364 = smul.addr %s363, 32
          %s365 = scalar_lea.vmem [#allocation3], %s364
          %s366 = smul.u32 8, %s34
          %368 = vsyncadd %s362, 0
          %s369 = smul.addr %s366, 4
          %s370 = scalar_lea.hbm %s0, %s369
          %s371 = sshll.u32 %s370, 4
          %s372 = int_to_ptr.hbm [resolvable:$true] %s371
          %s373 = sshll.u32 %s365, 4
          %s374 = int_to_ptr.vmem [resolvable:$true] %s373
          %379 = dma.hbm_to_vmem [thread:$0]  %s372, 512, %s374, %s362, 64, 64, 4
        $region40: #{tpu_custom_call.1} parent=35 // pred_fallthru
          _
        // Predicated region
        $region41: #{tpu_custom_call.1} parent=35 // pred_check
          %p380 = pneg %p87
        $region42: #{tpu_custom_call.1} parent=35 // pred_check_branch
          %382 = sbr.rel (%p380) target = $region44
        $region43: #{tpu_custom_call.1} parent=35 // pred_region
          %s383 = sand.u32 %s77, 1
          %s384 = sand.u32 %s77, 1
          %s385 = smul.addr %s384, 32
          %s386 = scalar_lea.vmem [#allocation6], %s385
          %s387 = smul.u32 8, %s34
          %s388 = smul.addr %s387, 2
          %s389 = sadd.s32 %s35, %s388
          %s390 = smul.addr %s389, 4
          %s391 = scalar_lea.vmem %s1, %s390
          // Predicated region
          $region45: #{tpu_custom_call.1} parent=43 // pred_check
            _
          $region46: #{tpu_custom_call.1} parent=43 // pred_check_branch
            %393 = sbr.rel (0) target = $region48
          $region47: #{tpu_custom_call.1} parent=43 // pred_region
            // Predicated region
            $region49: #{tpu_custom_call.1} parent=47 // pred_check
              _
            $region50: #{tpu_custom_call.1} parent=47 // pred_check_branch
              %395 = sbr.rel target = $region52
            $region51: #{tpu_custom_call.1} parent=47 // pred_region
              // Predicated region
              $region64: #{tpu_custom_call.1} parent=51 // pred_check
                _
              $region65: #{tpu_custom_call.1} parent=51 // pred_check_branch
                %425 = sbr.rel (0) target = $region67
              $region66: #{tpu_custom_call.1} parent=51 // pred_region
                loop: start=0, step=1, limit=1
                $region68: #{tpu_custom_call.1} parent=66 // loop_pre_header
                  _
                $region69: #{tpu_custom_call.1} parent=66 // loop_header
                  %s427 = sphi 0, %s431
                  %p428 = scmp.ge.s32.totalorder %s427, 1
                  %s432 = sphi %s391, %s391
                  %s433 = sphi %s386, %s386
                $region70: #{tpu_custom_call.1} parent=66 // loop_header_branch
                  %430 = sbr.rel (%p428) target = $region74
                $region71: #{tpu_custom_call.1} parent=66 // loop_body
                  _
                $region72: #{tpu_custom_call.1} parent=66 // loop_footer
                  %s431 = sadd.s32 1, %s427
                $region73: #{tpu_custom_call.1} parent=66 // loop_footer_branch
                  %426 = sbr.rel target = $region69
                $region74: #{tpu_custom_call.1} parent=66 // loop_exit
                  _
                %s435 = ssub.s32 16, 1
                loop: start=0, step=1, limit=1
                $region75: #{tpu_custom_call.1} parent=66 // loop_pre_header
                  _
                $region76: #{tpu_custom_call.1} parent=66 // loop_header
                  %s437 = sphi 0, %s441
                  %p438 = scmp.ge.s32.totalorder %s437, 1
                  %s442 = sphi %s391, %s391
                  %s443 = sphi %s386, %s386
                $region77: #{tpu_custom_call.1} parent=66 // loop_header_branch
                  %440 = sbr.rel (%p438) target = $region81
                $region78: #{tpu_custom_call.1} parent=66 // loop_body
                  %v444 = vld [vmem:[%s442] sm:%s435]
                  %445 = vst [vmem:[%s443] sm:%s435] %v444
                  %v446 = vld [vmem:[%s442 + $0x8] sm:%s435]
                  %447 = vst [vmem:[%s443 + $0x4] sm:%s435] %v446
                  %v448 = vld [vmem:[%s442 + $0x10] sm:%s435]
                  %449 = vst [vmem:[%s443 + $0x8] sm:%s435] %v448
                  %v450 = vld [vmem:[%s442 + $0x18] sm:%s435]
                  %451 = vst [vmem:[%s443 + $0xc] sm:%s435] %v450
                  %v452 = vld [vmem:[%s442 + $0x20] sm:%s435]
                  %453 = vst [vmem:[%s443 + $0x10] sm:%s435] %v452
                  %v454 = vld [vmem:[%s442 + $0x28] sm:%s435]
                  %455 = vst [vmem:[%s443 + $0x14] sm:%s435] %v454
                  %v456 = vld [vmem:[%s442 + $0x30] sm:%s435]
                  %457 = vst [vmem:[%s443 + $0x18] sm:%s435] %v456
                  %v458 = vld [vmem:[%s442 + $0x38] sm:%s435]
                  %459 = vst [vmem:[%s443 + $0x1c] sm:%s435] %v458
                $region79: #{tpu_custom_call.1} parent=66 // loop_footer
                  %s441 = sadd.s32 1, %s437
                $region80: #{tpu_custom_call.1} parent=66 // loop_footer_branch
                  %436 = sbr.rel target = $region76
                $region81: #{tpu_custom_call.1} parent=66 // loop_exit
                  _
              $region67: #{tpu_custom_call.1} parent=51 // pred_fallthru
                _
            $region52: #{tpu_custom_call.1} parent=47 // pred_fallthru
              _
            // Predicated region
            $region53: #{tpu_custom_call.1} parent=47 // pred_check
              _
            $region54: #{tpu_custom_call.1} parent=47 // pred_check_branch
              %397 = sbr.rel (0) target = $region56
            $region55: #{tpu_custom_call.1} parent=47 // pred_region
              %s399 = ssub.s32 16, 1
              loop: start=0, step=1, limit=1
              $region57: #{tpu_custom_call.1} parent=55 // loop_pre_header
                _
              $region58: #{tpu_custom_call.1} parent=55 // loop_header
                %s401 = sphi 0, %s405
                %p402 = scmp.ge.s32.totalorder %s401, 1
                %s406 = sphi %s391, %s391
                %s407 = sphi %s386, %s386
              $region59: #{tpu_custom_call.1} parent=55 // loop_header_branch
                %404 = sbr.rel (%p402) target = $region63
              $region60: #{tpu_custom_call.1} parent=55 // loop_body
                %v408 = vld [vmem:[%s406] sm:%s399]
                %409 = vst [vmem:[%s407] sm:%s399] %v408
                %v410 = vld [vmem:[%s406 + $0x8] sm:%s399]
                %411 = vst [vmem:[%s407 + $0x4] sm:%s399] %v410
                %v412 = vld [vmem:[%s406 + $0x10] sm:%s399]
                %413 = vst [vmem:[%s407 + $0x8] sm:%s399] %v412
                %v414 = vld [vmem:[%s406 + $0x18] sm:%s399]
                %415 = vst [vmem:[%s407 + $0xc] sm:%s399] %v414
                %v416 = vld [vmem:[%s406 + $0x20] sm:%s399]
                %417 = vst [vmem:[%s407 + $0x10] sm:%s399] %v416
                %v418 = vld [vmem:[%s406 + $0x28] sm:%s399]
                %419 = vst [vmem:[%s407 + $0x14] sm:%s399] %v418
                %v420 = vld [vmem:[%s406 + $0x30] sm:%s399]
                %421 = vst [vmem:[%s407 + $0x18] sm:%s399] %v420
                %v422 = vld [vmem:[%s406 + $0x38] sm:%s399]
                %423 = vst [vmem:[%s407 + $0x1c] sm:%s399] %v422
              $region61: #{tpu_custom_call.1} parent=55 // loop_footer
                %s405 = sadd.s32 1, %s401
              $region62: #{tpu_custom_call.1} parent=55 // loop_footer_branch
                %400 = sbr.rel target = $region58
              $region63: #{tpu_custom_call.1} parent=55 // loop_exit
                _
            $region56: #{tpu_custom_call.1} parent=47 // pred_fallthru
              _
          $region48: #{tpu_custom_call.1} parent=43 // pred_fallthru
            _
          %460 = vnop
        $region44: #{tpu_custom_call.1} parent=35 // pred_fallthru
          _
        // Predicated region
        $region82: #{tpu_custom_call.1} parent=35 // pred_check
          %p461 = pneg %p113
        $region83: #{tpu_custom_call.1} parent=35 // pred_check_branch
          %463 = sbr.rel (%p461) target = $region85
        $region84: #{tpu_custom_call.1} parent=35 // pred_region
          %s464 = smul.u32 8, %s34
          %p465 = scmp.lt.s32.totalorder %s464, 15
          %s466 = scalar_select %p465, %s464, 15
          %s467 = smul.addr %s466, 8
          %s468 = scalar_lea.vmem %s2, %s467
          %s469 = smul.u32 8, %s34
        $region85: #{tpu_custom_call.1} parent=35 // pred_fallthru
          _
        // Predicated region
        $region86: #{tpu_custom_call.1} parent=35 // pred_check
          %p470 = pneg %p223
        $region87: #{tpu_custom_call.1} parent=35 // pred_check_branch
          %472 = sbr.rel (%p470) target = $region89
        $region88: #{tpu_custom_call.1} parent=35 // pred_region
          %s473 = sand.u32 %s27, 1
          %s474 = scalar_lea.sflag [#allocation4], %s473
          %s475 = sand.u32 %s213, 1
          %s476 = smul.addr %s475, 64
          %s477 = scalar_lea.vmem [#allocation9], %s476
          %s478 = smul.u32 16, %s35
          %480 = vsyncadd %s474, 0
          %s481 = smul.addr %s478, 4
          %s482 = scalar_lea.hbm %s7, %s481
          %s483 = sshll.u32 %s482, 4
          %s484 = int_to_ptr.hbm [resolvable:$true] %s483
          %s485 = sshll.u32 %s477, 4
          %s486 = int_to_ptr.vmem [resolvable:$true] %s485
          %491 = dma.hbm_to_vmem [thread:$0]  %s484, 1024, %s486, %s474, 64, 64, 4
        $region89: #{tpu_custom_call.1} parent=35 // pred_fallthru
          _
      $region36: #{tpu_custom_call.1} parent=5 // pred_fallthru
        _
      %p492 = scmp.le.s32.totalorder 1, %s27
      %p493 = scmp.lt.s32.totalorder %s27, 5
      %p494 = pnand %p492, %p493
      %p495 = pneg %p494
      // Predicated region
      $region90: #{tpu_custom_call.1} parent=5 // pred_check
        _
      $region91: #{tpu_custom_call.1} parent=5 // pred_check_branch
        %497 = sbr.rel (%p494) target = $region93
      $region92: #{tpu_custom_call.1} parent=5 // pred_region
        %s498 = ssub.s32 %s27, 1
        %s499 = sand.u32 %s32, 1
        %s500 = scalar_lea.sflag [#allocation4], %s499
        %s501 = sand.u32 %s52, 1
        %s502 = smul.addr %s501, 32
        %s503 = scalar_lea.vmem [#allocation3], %s502
        // Predicated region
        $region94: #{tpu_custom_call.1} parent=92 // pred_check
          %p504 = pneg %p65
        $region95: #{tpu_custom_call.1} parent=92 // pred_check_branch
          %506 = sbr.rel (%p504) target = $region97
        $region96: #{tpu_custom_call.1} parent=92 // pred_region
          %508 = dma.done %s500, 512
        $region97: #{tpu_custom_call.1} parent=92 // pred_fallthru
          _
        %s509 = sand.u32 %s80, 1
        %s510 = sand.u32 %s80, 1
        %s511 = smul.addr %s510, 32
        %s512 = scalar_lea.vmem [#allocation6], %s511
        // Predicated region
        $region98: #{tpu_custom_call.1} parent=92 // pred_check
          %p513 = pneg %p93
        $region99: #{tpu_custom_call.1} parent=92 // pred_check_branch
          %515 = sbr.rel (%p513) target = $region101
        $region100: #{tpu_custom_call.1} parent=92 // pred_region
          _
        $region101: #{tpu_custom_call.1} parent=92 // pred_fallthru
          _
        // Predicated region
        $region102: #{tpu_custom_call.1} parent=92 // pred_check
          %p516 = pneg %p140
        $region103: #{tpu_custom_call.1} parent=92 // pred_check_branch
          %518 = sbr.rel (%p516) target = $region105
        $region104: #{tpu_custom_call.1} parent=92 // pred_region
          %520 = dma.done [#allocation8], 1024
        $region105: #{tpu_custom_call.1} parent=92 // pred_fallthru
          _
        %s521 = sand.u32 %s32, 1
        %s522 = scalar_lea.sflag [#allocation4], %s521
        %s523 = sand.u32 %s216, 1
        %s524 = smul.addr %s523, 64
        %s525 = scalar_lea.vmem [#allocation9], %s524
        // Predicated region
        $region106: #{tpu_custom_call.1} parent=92 // pred_check
          %p526 = pneg %p229
        $region107: #{tpu_custom_call.1} parent=92 // pred_check_branch
          %528 = sbr.rel (%p526) target = $region109
        $region108: #{tpu_custom_call.1} parent=92 // pred_region
          %530 = dma.done %s522, 1024
        $region109: #{tpu_custom_call.1} parent=92 // pred_fallthru
          _
        // Predicated region
        $region110: #{tpu_custom_call.1} parent=92 // pred_check
          %p531 = pneg %p250
        $region111: #{tpu_custom_call.1} parent=92 // pred_check_branch
          %533 = sbr.rel (%p531) target = $region113
        $region112: #{tpu_custom_call.1} parent=92 // pred_region
          %535 = dma.done [#allocation8], 1152
        $region113: #{tpu_custom_call.1} parent=92 // pred_fallthru
          _
        %s536 = sand.u32 %s32, 1
        %s537 = scalar_lea.sflag [#allocation4], %s536
        %s538 = sand.u32 %s52, 1
        %s539 = smul.addr %s538, 32
        %s540 = scalar_lea.vmem [#allocation3], %s539
        %p541 = pneg %p65
        %p542 = pneg %p62
        %s543 = sand.u32 %s80, 1
        %s544 = sand.u32 %s80, 1
        %s545 = smul.addr %s544, 32
        %s546 = scalar_lea.vmem [#allocation6], %s545
        %p547 = pneg %p93
        %p548 = pneg %p90
        %s549 = smul.u32 8, %s36
        %p550 = scmp.lt.s32.totalorder %s549, 15
        %s551 = scalar_select %p550, %s549, 15
        %s552 = smul.addr %s551, 8
        %s553 = scalar_lea.vmem %s2, %s552
        %p554 = pneg %p119
        %p555 = pneg %p116
        %p556 = pneg %p140
        %p557 = pneg %p137
        %p558 = pneg %p161
        %p559 = pneg %p158
        %p560 = pneg %p182
        %p561 = pneg %p179
        %p562 = pneg %p203
        %p563 = pneg %p200
        %s564 = sand.u32 %s32, 1
        %s565 = scalar_lea.sflag [#allocation4], %s564
        %s566 = sand.u32 %s216, 1
        %s567 = smul.addr %s566, 64
        %s568 = scalar_lea.vmem [#allocation9], %s567
        %p569 = pneg %p229
        %p570 = pneg %p226
        %p571 = pneg %p250
        %p572 = pneg %p247
        %p573 = pneg %p276
        %p574 = pneg %p273
        %s575 = sand.u32 %s263, 1
        %s576 = scalar_lea.sflag [#allocation5], %s575
        %s577 = sand.u32 %s263, 1
        %s578 = smul.addr %s577, 64
        %s579 = scalar_lea.vmem [#allocation11], %s578
        %p580 = pneg %p302
        %p581 = pneg %p299
        %s582 = sand.u32 %s289, 1
        %s583 = scalar_lea.sflag [#allocation13], %s582
        %s584 = sand.u32 %s289, 1
        %s585 = smul.addr %s584, 64
        %s586 = scalar_lea.vmem [#allocation12], %s585
        %s587 = smul.u32 8, %s36
        %s588 = smul.u32 8, %s36
        %s589 = smul.u32 8, %s36
        %p590 = scmp.lt.s32.totalorder %s589, 15
        %s591 = scalar_select %p590, %s589, 15
        %s592 = smul.addr %s591, 8
        %s593 = scalar_lea.vmem %s2, %s592
        %s594 = smul.u32 8, %s36
        %s595 = smul.u32 16, %s37
        %s596 = smul.u32 8, %s36
        %s597 = smul.u32 8, %s36
        %p598 = scmp.eq.s32.totalorder %s37, 0
        // Predicated region
        $region114: #{tpu_custom_call.1} parent=92 // pred_check
          %p599 = pneg %p598
        $region115: #{tpu_custom_call.1} parent=92 // pred_check_branch
          %601 = sbr.rel (%p599) target = $region117
        $region116: #{tpu_custom_call.1} parent=92 // pred_region
          %602 = vst [vmem:[#allocation2] sm:$0xff] 0.0
          %603 = vst [vmem:[#allocation2 + $0x8] sm:$0xff] 0.0
          %604 = vst [vmem:[#allocation2 + $0x10] sm:$0xff] 0.0
          %605 = vst [vmem:[#allocation2 + $0x18] sm:$0xff] 0.0
          %606 = vst [vmem:[#allocation2 + $0x20] sm:$0xff] 0.0
          %607 = vst [vmem:[#allocation2 + $0x28] sm:$0xff] 0.0
          %608 = vst [vmem:[#allocation2 + $0x30] sm:$0xff] 0.0
          %609 = vst [vmem:[#allocation2 + $0x38] sm:$0xff] 0.0
        $region117: #{tpu_custom_call.1} parent=92 // pred_fallthru
          _
        %v610 = vld [vmem:[#allocation2] sm:$0xff]
        %v611 = vld [vmem:[#allocation2 + $0x8] sm:$0xff]
        %v612 = vld [vmem:[#allocation2 + $0x10] sm:$0xff]
        %v613 = vld [vmem:[#allocation2 + $0x18] sm:$0xff]
        %v614 = vld [vmem:[#allocation2 + $0x20] sm:$0xff]
        %v615 = vld [vmem:[#allocation2 + $0x28] sm:$0xff]
        %v616 = vld [vmem:[#allocation2 + $0x30] sm:$0xff]
        %v617 = vld [vmem:[#allocation2 + $0x38] sm:$0xff]
        %v618 = vld [vmem:[%s512] sm:$0xf]
        %v619 = vld [vmem:[%s512 + $0x4] sm:$0xf]
        %v620 = vld [vmem:[%s512 + $0x8] sm:$0xf]
        %v621 = vld [vmem:[%s512 + $0xc] sm:$0xf]
        %v622 = vld [vmem:[%s512 + $0x10] sm:$0xf]
        %v623 = vld [vmem:[%s512 + $0x14] sm:$0xf]
        %v624 = vld [vmem:[%s512 + $0x18] sm:$0xf]
        %v625 = vld [vmem:[%s512 + $0x1c] sm:$0xf]
        %v626 = vld [vmem:[%s525] sm:$0xf]
        %v627 = vld [vmem:[%s525 + $0x4] sm:$0xf]
        %v628 = vld [vmem:[%s525 + $0x8] sm:$0xf]
        %v629 = vld [vmem:[%s525 + $0xc] sm:$0xf]
        %v630 = vld [vmem:[%s525 + $0x10] sm:$0xf]
        %v631 = vld [vmem:[%s525 + $0x14] sm:$0xf]
        %v632 = vld [vmem:[%s525 + $0x18] sm:$0xf]
        %v633 = vld [vmem:[%s525 + $0x1c] sm:$0xf]
        %v634 = vld [vmem:[%s525 + $0x20] sm:$0xf]
        %v635 = vld [vmem:[%s525 + $0x24] sm:$0xf]
        %v636 = vld [vmem:[%s525 + $0x28] sm:$0xf]
        %v637 = vld [vmem:[%s525 + $0x2c] sm:$0xf]
        %v638 = vld [vmem:[%s525 + $0x30] sm:$0xf]
        %v639 = vld [vmem:[%s525 + $0x34] sm:$0xf]
        %v640 = vld [vmem:[%s525 + $0x38] sm:$0xf]
        %v641 = vld [vmem:[%s525 + $0x3c] sm:$0xf]
        %v650 = vunpack.c.l.b16 %v618
        %v651 = vunpack.c.l.b16 %v619
        %v652 = vunpack.c.l.b16 %v620
        %v653 = vunpack.c.l.b16 %v621
        %v654 = vunpack.c.l.b16 %v622
        %v655 = vunpack.c.l.b16 %v623
        %v656 = vunpack.c.l.b16 %v624
        %v657 = vunpack.c.l.b16 %v625
        %v658 = vpack.c.b16 %v651, %v650
        %v659 = vpack.c.b16 %v653, %v652
        %v660 = vpack.c.b16 %v655, %v654
        %v661 = vpack.c.b16 %v657, %v656
        %v682 = vunpack.c.l.b16 %v626
        %v683 = vunpack.c.l.b16 %v627
        %v684 = vunpack.c.l.b16 %v628
        %v685 = vunpack.c.l.b16 %v629
        %v686 = vunpack.c.l.b16 %v630
        %v687 = vunpack.c.l.b16 %v631
        %v688 = vunpack.c.l.b16 %v632
        %v689 = vunpack.c.l.b16 %v633
        %v690 = vunpack.c.l.b16 %v634
        %v691 = vunpack.c.l.b16 %v635
        %v692 = vunpack.c.l.b16 %v636
        %v693 = vunpack.c.l.b16 %v637
        %v694 = vunpack.c.l.b16 %v638
        %v695 = vunpack.c.l.b16 %v639
        %v696 = vunpack.c.l.b16 %v640
        %v697 = vunpack.c.l.b16 %v641
        %v698 = vpack.c.b16 %v683, %v682
        %v699 = vpack.c.b16 %v685, %v684
        %v700 = vpack.c.b16 %v687, %v686
        %v701 = vpack.c.b16 %v689, %v688
        %v702 = vpack.c.b16 %v691, %v690
        %v703 = vpack.c.b16 %v693, %v692
        %v704 = vpack.c.b16 %v695, %v694
        %v705 = vpack.c.b16 %v697, %v696
        %714 = vmatpush.bf16.msra.mxu0 %v705
        %715 = vmatpush.bf16.msra.mxu0 %v704
        %716 = vmatpush.bf16.msra.mxu0 %v703
        %717 = vmatpush.bf16.msra.mxu0 %v702
        %718 = vmatpush.bf16.msra.mxu0 %v701
        %719 = vmatpush.bf16.msra.mxu0 %v700
        %720 = vmatpush.bf16.msra.mxu0 %v699
        %721 = vmatpush.bf16.msra.mxu0 %v698
        %722 = vmatmul.bf16.gmra.mxu0 %v658
        %v723 = vpop.f32.mrf.mxu0
        %v724 = vadd.f32 0.0, %v723
        %v725 = vpop.f32.mrf.mxu0
        %v726 = vadd.f32 0.0, %v725
        %727 = vmatmul.bf16.gmra.mxu0 %v659
        %v728 = vpop.f32.mrf.mxu0
        %v729 = vadd.f32 0.0, %v728
        %v730 = vpop.f32.mrf.mxu0
        %v731 = vadd.f32 0.0, %v730
        %732 = vmatmul.bf16.gmra.mxu0 %v660
        %v733 = vpop.f32.mrf.mxu0
        %v734 = vadd.f32 0.0, %v733
        %v735 = vpop.f32.mrf.mxu0
        %v736 = vadd.f32 0.0, %v735
        %737 = vmatmul.bf16.gmra.mxu0 %v661
        %v738 = vpop.f32.mrf.mxu0
        %v739 = vadd.f32 0.0, %v738
        %v740 = vpop.f32.mrf.mxu0
        %v741 = vadd.f32 0.0, %v740
        %742 = vdwg.mxu0
        %v743 = vadd.f32 %v610, %v724
        %v744 = vadd.f32 %v611, %v726
        %v745 = vadd.f32 %v612, %v729
        %v746 = vadd.f32 %v613, %v731
        %v747 = vadd.f32 %v614, %v734
        %v748 = vadd.f32 %v615, %v736
        %v749 = vadd.f32 %v616, %v739
        %v750 = vadd.f32 %v617, %v741
        %751 = vst [vmem:[#allocation2] sm:$0xff] %v743
        %752 = vst [vmem:[#allocation2 + $0x8] sm:$0xff] %v744
        %753 = vst [vmem:[#allocation2 + $0x10] sm:$0xff] %v745
        %754 = vst [vmem:[#allocation2 + $0x18] sm:$0xff] %v746
        %755 = vst [vmem:[#allocation2 + $0x20] sm:$0xff] %v747
        %756 = vst [vmem:[#allocation2 + $0x28] sm:$0xff] %v748
        %757 = vst [vmem:[#allocation2 + $0x30] sm:$0xff] %v749
        %758 = vst [vmem:[#allocation2 + $0x38] sm:$0xff] %v750
        %p759 = scmp.eq.s32.totalorder %s37, 1
        // Predicated region
        $region118: #{tpu_custom_call.1} parent=92 // pred_check
          %p760 = pneg %p759
        $region119: #{tpu_custom_call.1} parent=92 // pred_check_branch
          %762 = sbr.rel (%p760) target = $region121
        $region120: #{tpu_custom_call.1} parent=92 // pred_region
          %v763 = vld [vmem:[%s503] sm:$0xf]
          %v764 = vld [vmem:[%s503 + $0x4] sm:$0xf]
          %v765 = vld [vmem:[%s503 + $0x8] sm:$0xf]
          %v766 = vld [vmem:[%s503 + $0xc] sm:$0xf]
          %v767 = vld [vmem:[%s503 + $0x10] sm:$0xf]
          %v768 = vld [vmem:[%s503 + $0x14] sm:$0xf]
          %v769 = vld [vmem:[%s503 + $0x18] sm:$0xf]
          %v770 = vld [vmem:[%s503 + $0x1c] sm:$0xf]
          %v771 = vld [vmem:[#allocation7] sm:$0xf]
          %v772 = vld [vmem:[#allocation7 + $0x4] sm:$0xf]
          %v773 = vld [vmem:[#allocation7 + $0x8] sm:$0xf]
          %v774 = vld [vmem:[#allocation7 + $0xc] sm:$0xf]
          %v775 = vld [vmem:[#allocation7 + $0x10] sm:$0xf]
          %v776 = vld [vmem:[#allocation7 + $0x14] sm:$0xf]
          %v777 = vld [vmem:[#allocation7 + $0x18] sm:$0xf]
          %v778 = vld [vmem:[#allocation7 + $0x1c] sm:$0xf]
          %v779 = vld [vmem:[#allocation7 + $0x20] sm:$0xf]
          %v780 = vld [vmem:[#allocation7 + $0x24] sm:$0xf]
          %v781 = vld [vmem:[#allocation7 + $0x28] sm:$0xf]
          %v782 = vld [vmem:[#allocation7 + $0x2c] sm:$0xf]
          %v783 = vld [vmem:[#allocation7 + $0x30] sm:$0xf]
          %v784 = vld [vmem:[#allocation7 + $0x34] sm:$0xf]
          %v785 = vld [vmem:[#allocation7 + $0x38] sm:$0xf]
          %v786 = vld [vmem:[#allocation7 + $0x3c] sm:$0xf]
          %v787 = vld [vmem:[%s4] sm:$0x1]
          %v789 = vperm.slane %v787, 0
          %v799 = vunpack.c.l.b16 %v763
          %v800 = vunpack.c.l.b16 %v764
          %v801 = vunpack.c.l.b16 %v765
          %v802 = vunpack.c.l.b16 %v766
          %v803 = vunpack.c.l.b16 %v767
          %v804 = vunpack.c.l.b16 %v768
          %v805 = vunpack.c.l.b16 %v769
          %v806 = vunpack.c.l.b16 %v770
          %v807 = vpack.c.b16 %v800, %v799
          %v808 = vpack.c.b16 %v802, %v801
          %v809 = vpack.c.b16 %v804, %v803
          %v810 = vpack.c.b16 %v806, %v805
          %v831 = vunpack.c.l.b16 %v771
          %v832 = vunpack.c.l.b16 %v772
          %v833 = vunpack.c.l.b16 %v773
          %v834 = vunpack.c.l.b16 %v774
          %v835 = vunpack.c.l.b16 %v775
          %v836 = vunpack.c.l.b16 %v776
          %v837 = vunpack.c.l.b16 %v777
          %v838 = vunpack.c.l.b16 %v778
          %v839 = vunpack.c.l.b16 %v779
          %v840 = vunpack.c.l.b16 %v780
          %v841 = vunpack.c.l.b16 %v781
          %v842 = vunpack.c.l.b16 %v782
          %v843 = vunpack.c.l.b16 %v783
          %v844 = vunpack.c.l.b16 %v784
          %v845 = vunpack.c.l.b16 %v785
          %v846 = vunpack.c.l.b16 %v786
          %v847 = vpack.c.b16 %v832, %v831
          %v848 = vpack.c.b16 %v834, %v833
          %v849 = vpack.c.b16 %v836, %v835
          %v850 = vpack.c.b16 %v838, %v837
          %v851 = vpack.c.b16 %v840, %v839
          %v852 = vpack.c.b16 %v842, %v841
          %v853 = vpack.c.b16 %v844, %v843
          %v854 = vpack.c.b16 %v846, %v845
          %863 = vmatpush.bf16.msra.mxu0 %v854
          %864 = vmatpush.bf16.msra.mxu0 %v853
          %865 = vmatpush.bf16.msra.mxu0 %v852
          %866 = vmatpush.bf16.msra.mxu0 %v851
          %867 = vmatpush.bf16.msra.mxu0 %v850
          %868 = vmatpush.bf16.msra.mxu0 %v849
          %869 = vmatpush.bf16.msra.mxu0 %v848
          %870 = vmatpush.bf16.msra.mxu0 %v847
          %871 = vmatmul.bf16.gmra.mxu0 %v807
          %v872 = vpop.f32.mrf.mxu0
          %v873 = vadd.f32 %v789, %v872
          %v874 = vpop.f32.mrf.mxu0
          %v875 = vadd.f32 %v789, %v874
          %876 = vmatmul.bf16.gmra.mxu0 %v808
          %v877 = vpop.f32.mrf.mxu0
          %v878 = vadd.f32 %v789, %v877
          %v879 = vpop.f32.mrf.mxu0
          %v880 = vadd.f32 %v789, %v879
          %881 = vmatmul.bf16.gmra.mxu0 %v809
          %v882 = vpop.f32.mrf.mxu0
          %v883 = vadd.f32 %v789, %v882
          %v884 = vpop.f32.mrf.mxu0
          %v885 = vadd.f32 %v789, %v884
          %886 = vmatmul.bf16.gmra.mxu0 %v810
          %v887 = vpop.f32.mrf.mxu0
          %v888 = vadd.f32 %v789, %v887
          %v889 = vpop.f32.mrf.mxu0
          %v890 = vadd.f32 %v789, %v889
          %891 = vdwg.mxu0
          %892 = vadd.xlane.f32.xlu0 %v873
          %v893 = vpop.xlane.xlu0 %892
          %894 = vadd.xlane.f32.xlu0 %v875
          %v895 = vpop.xlane.xlu0 %894
          %896 = vadd.xlane.f32.xlu0 %v878
          %v897 = vpop.xlane.xlu0 %896
          %898 = vadd.xlane.f32.xlu0 %v880
          %v899 = vpop.xlane.xlu0 %898
          %900 = vadd.xlane.f32.xlu0 %v883
          %v901 = vpop.xlane.xlu0 %900
          %902 = vadd.xlane.f32.xlu0 %v885
          %v903 = vpop.xlane.xlu0 %902
          %904 = vadd.xlane.f32.xlu0 %v888
          %v905 = vpop.xlane.xlu0 %904
          %906 = vadd.xlane.f32.xlu0 %v890
          %v907 = vpop.xlane.xlu0 %906
          %v908 = vrcp.pop 128.0
          %v909 = vmul.f32 128.0, %v908
          %v910 = vsub.f32 1.0, %v909
          %v911 = vmul.f32 %v908, %v910
          %v912 = vadd.f32 %v908, %v911
          %vm913 = vweird.f32 %v908
          %v914 = vsel %vm913, %v908, %v912
          %v915 = vmul.f32 %v893, %v914
          %v916 = vmul.f32 %v895, %v914
          %v917 = vmul.f32 %v897, %v914
          %v918 = vmul.f32 %v899, %v914
          %v919 = vmul.f32 %v901, %v914
          %v920 = vmul.f32 %v903, %v914
          %v921 = vmul.f32 %v905, %v914
          %v922 = vmul.f32 %v907, %v914
          %v923 = vmul.f32 %v873, %v873
          %v924 = vmul.f32 %v875, %v875
          %v925 = vmul.f32 %v878, %v878
          %v926 = vmul.f32 %v880, %v880
          %v927 = vmul.f32 %v883, %v883
          %v928 = vmul.f32 %v885, %v885
          %v929 = vmul.f32 %v888, %v888
          %v930 = vmul.f32 %v890, %v890
          %931 = vadd.xlane.f32.xlu0 %v923
          %v932 = vpop.xlane.xlu0 %931
          %933 = vadd.xlane.f32.xlu0 %v924
          %v934 = vpop.xlane.xlu0 %933
          %935 = vadd.xlane.f32.xlu0 %v925
          %v936 = vpop.xlane.xlu0 %935
          %937 = vadd.xlane.f32.xlu0 %v926
          %v938 = vpop.xlane.xlu0 %937
          %939 = vadd.xlane.f32.xlu0 %v927
          %v940 = vpop.xlane.xlu0 %939
          %941 = vadd.xlane.f32.xlu0 %v928
          %v942 = vpop.xlane.xlu0 %941
          %943 = vadd.xlane.f32.xlu0 %v929
          %v944 = vpop.xlane.xlu0 %943
          %945 = vadd.xlane.f32.xlu0 %v930
          %v946 = vpop.xlane.xlu0 %945
          %v947 = vmul.f32 %v932, %v914
          %v948 = vmul.f32 %v934, %v914
          %v949 = vmul.f32 %v936, %v914
          %v950 = vmul.f32 %v938, %v914
          %v951 = vmul.f32 %v940, %v914
          %v952 = vmul.f32 %v942, %v914
          %v953 = vmul.f32 %v944, %v914
          %v954 = vmul.f32 %v946, %v914
          %v955 = vmul.f32 %v915, %v915
          %v956 = vmul.f32 %v916, %v916
          %v957 = vmul.f32 %v917, %v917
          %v958 = vmul.f32 %v918, %v918
          %v959 = vmul.f32 %v919, %v919
          %v960 = vmul.f32 %v920, %v920
          %v961 = vmul.f32 %v921, %v921
          %v962 = vmul.f32 %v922, %v922
          %v963 = vsub.f32 %v947, %v955
          %v964 = vsub.f32 %v948, %v956
          %v965 = vsub.f32 %v949, %v957
          %v966 = vsub.f32 %v950, %v958
          %v967 = vsub.f32 %v951, %v959
          %v968 = vsub.f32 %v952, %v960
          %v969 = vsub.f32 %v953, %v961
          %v970 = vsub.f32 %v954, %v962
          %v971 = vadd.f32 %v963, 1e-05
          %v972 = vadd.f32 %v964, 1e-05
          %v973 = vadd.f32 %v965, 1e-05
          %v974 = vadd.f32 %v966, 1e-05
          %v975 = vadd.f32 %v967, 1e-05
          %v976 = vadd.f32 %v968, 1e-05
          %v977 = vadd.f32 %v969, 1e-05
          %v978 = vadd.f32 %v970, 1e-05
          %v979 = vrsqrt.pop %v971
          %v980 = vmul.f32 %v979, %v971
          %v981 = vmul.f32 %v980, %v979
          %v982 = vmul.f32 0.5, %v981
          %v983 = vsub.f32 1.5, %v982
          %v984 = vmul.f32 %v979, %v983
          %vm985 = vweird.f32 %v971
          %vm986 = vweird.f32 %v979
          %vm987 = vmor %vm985, %vm986
          %v988 = vsel %vm987, %v979, %v984
          %v989 = vrsqrt.pop %v972
          %v990 = vmul.f32 %v989, %v972
          %v991 = vmul.f32 %v990, %v989
          %v992 = vmul.f32 0.5, %v991
          %v993 = vsub.f32 1.5, %v992
          %v994 = vmul.f32 %v989, %v993
          %vm995 = vweird.f32 %v972
          %vm996 = vweird.f32 %v989
          %vm997 = vmor %vm995, %vm996
          %v998 = vsel %vm997, %v989, %v994
          %v999 = vrsqrt.pop %v973
          %v1000 = vmul.f32 %v999, %v973
          %v1001 = vmul.f32 %v1000, %v999
          %v1002 = vmul.f32 0.5, %v1001
          %v1003 = vsub.f32 1.5, %v1002
          %v1004 = vmul.f32 %v999, %v1003
          %vm1005 = vweird.f32 %v973
          %vm1006 = vweird.f32 %v999
          %vm1007 = vmor %vm1005, %vm1006
          %v1008 = vsel %vm1007, %v999, %v1004
          %v1009 = vrsqrt.pop %v974
          %v1010 = vmul.f32 %v1009, %v974
          %v1011 = vmul.f32 %v1010, %v1009
          %v1012 = vmul.f32 0.5, %v1011
          %v1013 = vsub.f32 1.5, %v1012
          %v1014 = vmul.f32 %v1009, %v1013
          %vm1015 = vweird.f32 %v974
          %vm1016 = vweird.f32 %v1009
          %vm1017 = vmor %vm1015, %vm1016
          %v1018 = vsel %vm1017, %v1009, %v1014
          %v1019 = vrsqrt.pop %v975
          %v1020 = vmul.f32 %v1019, %v975
          %v1021 = vmul.f32 %v1020, %v1019
          %v1022 = vmul.f32 0.5, %v1021
          %v1023 = vsub.f32 1.5, %v1022
          %v1024 = vmul.f32 %v1019, %v1023
          %vm1025 = vweird.f32 %v975
          %vm1026 = vweird.f32 %v1019
          %vm1027 = vmor %vm1025, %vm1026
          %v1028 = vsel %vm1027, %v1019, %v1024
          %v1029 = vrsqrt.pop %v976
          %v1030 = vmul.f32 %v1029, %v976
          %v1031 = vmul.f32 %v1030, %v1029
          %v1032 = vmul.f32 0.5, %v1031
          %v1033 = vsub.f32 1.5, %v1032
          %v1034 = vmul.f32 %v1029, %v1033
          %vm1035 = vweird.f32 %v976
          %vm1036 = vweird.f32 %v1029
          %vm1037 = vmor %vm1035, %vm1036
          %v1038 = vsel %vm1037, %v1029, %v1034
          %v1039 = vrsqrt.pop %v977
          %v1040 = vmul.f32 %v1039, %v977
          %v1041 = vmul.f32 %v1040, %v1039
          %v1042 = vmul.f32 0.5, %v1041
          %v1043 = vsub.f32 1.5, %v1042
          %v1044 = vmul.f32 %v1039, %v1043
          %vm1045 = vweird.f32 %v977
          %vm1046 = vweird.f32 %v1039
          %vm1047 = vmor %vm1045, %vm1046
          %v1048 = vsel %vm1047, %v1039, %v1044
          %v1049 = vrsqrt.pop %v978
          %v1050 = vmul.f32 %v1049, %v978
          %v1051 = vmul.f32 %v1050, %v1049
          %v1052 = vmul.f32 0.5, %v1051
          %v1053 = vsub.f32 1.5, %v1052
          %v1054 = vmul.f32 %v1049, %v1053
          %vm1055 = vweird.f32 %v978
          %vm1056 = vweird.f32 %v1049
          %vm1057 = vmor %vm1055, %vm1056
          %v1058 = vsel %vm1057, %v1049, %v1054
          %v1059 = vsub.f32 %v873, %v915
          %v1060 = vsub.f32 %v875, %v916
          %v1061 = vsub.f32 %v878, %v917
          %v1062 = vsub.f32 %v880, %v918
          %v1063 = vsub.f32 %v883, %v919
          %v1064 = vsub.f32 %v885, %v920
          %v1065 = vsub.f32 %v888, %v921
          %v1066 = vsub.f32 %v890, %v922
          %v1067 = vmul.f32 %v1059, %v988
          %v1068 = vmul.f32 %v1060, %v998
          %v1069 = vmul.f32 %v1061, %v1008
          %v1070 = vmul.f32 %v1062, %v1018
          %v1071 = vmul.f32 %v1063, %v1028
          %v1072 = vmul.f32 %v1064, %v1038
          %v1073 = vmul.f32 %v1065, %v1048
          %v1074 = vmul.f32 %v1066, %v1058
          %v1075 = vld [vmem:[%s5] sm:$0x1]
          %v1077 = vperm.slane %v1075, 0
          %v1079 = vmul.f32 %v1067, %v1077
          %v1080 = vmul.f32 %v1068, %v1077
          %v1081 = vmul.f32 %v1069, %v1077
          %v1082 = vmul.f32 %v1070, %v1077
          %v1083 = vmul.f32 %v1071, %v1077
          %v1084 = vmul.f32 %v1072, %v1077
          %v1085 = vmul.f32 %v1073, %v1077
          %v1086 = vmul.f32 %v1074, %v1077
          %v1087 = vld [vmem:[%s6] sm:$0x1]
          %v1089 = vperm.slane %v1087, 0
          %v1091 = vadd.f32 %v1079, %v1089
          %v1092 = vadd.f32 %v1080, %v1089
          %v1093 = vadd.f32 %v1081, %v1089
          %v1094 = vadd.f32 %v1082, %v1089
          %v1095 = vadd.f32 %v1083, %v1089
          %v1096 = vadd.f32 %v1084, %v1089
          %v1097 = vadd.f32 %v1085, %v1089
          %v1098 = vadd.f32 %v1086, %v1089
          %v1099 = vmax.f32 %v1091, 0.0
          %v1100 = vmax.f32 %v1092, 0.0
          %v1101 = vmax.f32 %v1093, 0.0
          %v1102 = vmax.f32 %v1094, 0.0
          %v1103 = vmax.f32 %v1095, 0.0
          %v1104 = vmax.f32 %v1096, 0.0
          %v1105 = vmax.f32 %v1097, 0.0
          %v1106 = vmax.f32 %v1098, 0.0
          %v1107 = vld [vmem:[%s593] sm:$0xff]
          %v1108 = vld [vmem:[%s593 + $0x8] sm:$0xff]
          %v1109 = vld [vmem:[%s593 + $0x10] sm:$0xff]
          %v1110 = vld [vmem:[%s593 + $0x18] sm:$0xff]
          %v1111 = vld [vmem:[%s593 + $0x20] sm:$0xff]
          %v1112 = vld [vmem:[%s593 + $0x28] sm:$0xff]
          %v1113 = vld [vmem:[%s593 + $0x30] sm:$0xff]
          %v1114 = vld [vmem:[%s593 + $0x38] sm:$0xff]
          %v1115 = vlaneseq
          %v1116 = vand.u32 %v1115, 127
          %1117 = vset.pattern.permute.xlu0 0
          %1118 = vperm.xlu0 %1117, %v1107
          %v1119 = vpop.permute.xlu0 %1118
          %1120 = vset.pattern.permute.xlu0 0
          %1121 = vperm.xlu0 %1120, %v1108
          %v1122 = vpop.permute.xlu0 %1121
          %1123 = vset.pattern.permute.xlu0 0
          %1124 = vperm.xlu0 %1123, %v1109
          %v1125 = vpop.permute.xlu0 %1124
          %1126 = vset.pattern.permute.xlu0 0
          %1127 = vperm.xlu0 %1126, %v1110
          %v1128 = vpop.permute.xlu0 %1127
          %1129 = vset.pattern.permute.xlu0 0
          %1130 = vperm.xlu0 %1129, %v1111
          %v1131 = vpop.permute.xlu0 %1130
          %1132 = vset.pattern.permute.xlu0 0
          %1133 = vperm.xlu0 %1132, %v1112
          %v1134 = vpop.permute.xlu0 %1133
          %1135 = vset.pattern.permute.xlu0 0
          %1136 = vperm.xlu0 %1135, %v1113
          %v1137 = vpop.permute.xlu0 %1136
          %1138 = vset.pattern.permute.xlu0 0
          %1139 = vperm.xlu0 %1138, %v1114
          %v1140 = vpop.permute.xlu0 %1139
          %vm1141 = vcmp.eq.s32.totalorder %v1116, %v1119
          %vm1142 = vcmp.eq.s32.totalorder %v1116, %v1122
          %vm1143 = vcmp.eq.s32.totalorder %v1116, %v1125
          %vm1144 = vcmp.eq.s32.totalorder %v1116, %v1128
          %vm1145 = vcmp.eq.s32.totalorder %v1116, %v1131
          %vm1146 = vcmp.eq.s32.totalorder %v1116, %v1134
          %vm1147 = vcmp.eq.s32.totalorder %v1116, %v1137
          %vm1148 = vcmp.eq.s32.totalorder %v1116, %v1140
          %v1149 = vsel %vm1141, 1, 0
          %v1150 = vsel %vm1142, 1, 0
          %v1151 = vsel %vm1143, 1, 0
          %v1152 = vsel %vm1144, 1, 0
          %v1153 = vsel %vm1145, 1, 0
          %v1154 = vsel %vm1146, 1, 0
          %v1155 = vsel %vm1147, 1, 0
          %v1156 = vsel %vm1148, 1, 0
          %v1157 = vcvt.s32.f32 %v1149
          %v1158 = vcvt.s32.f32 %v1150
          %v1159 = vcvt.s32.f32 %v1151
          %v1160 = vcvt.s32.f32 %v1152
          %v1161 = vcvt.s32.f32 %v1153
          %v1162 = vcvt.s32.f32 %v1154
          %v1163 = vcvt.s32.f32 %v1155
          %v1164 = vcvt.s32.f32 %v1156
          %v1165 = vld [vmem:[#allocation10] sm:$0xff]
          %v1166 = vld [vmem:[#allocation10 + $0x8] sm:$0xff]
          %v1167 = vld [vmem:[#allocation10 + $0x10] sm:$0xff]
          %v1168 = vld [vmem:[#allocation10 + $0x18] sm:$0xff]
          %v1169 = vld [vmem:[#allocation10 + $0x20] sm:$0xff]
          %v1170 = vld [vmem:[#allocation10 + $0x28] sm:$0xff]
          %v1171 = vld [vmem:[#allocation10 + $0x30] sm:$0xff]
          %v1172 = vld [vmem:[#allocation10 + $0x38] sm:$0xff]
          %v1173 = vld [vmem:[#allocation10 + $0x40] sm:$0xff]
          %vm1174 = vcmask 588800
          %v1176 = vsel %vm1174, %v1157, 0
          %v1179 = vsel %vm1174, %v1158, 0
          %v1182 = vsel %vm1174, %v1159, 0
          %v1185 = vsel %vm1174, %v1160, 0
          %v1188 = vsel %vm1174, %v1161, 0
          %v1191 = vsel %vm1174, %v1162, 0
          %v1194 = vsel %vm1174, %v1163, 0
          %v1197 = vsel %vm1174, %v1164, 0
          %1199 = vmatpush.msra.mxu0 0.0
          %1200 = vmatpush.msra.mxu0 0.0
          %1201 = vmatpush.msra.mxu0 0.0
          %1202 = vmatpush.msra.mxu0 0.0
          %1203 = vmatpush.msra.mxu0 0.0
          %1204 = vmatpush.msra.mxu0 0.0
          %1205 = vmatpush.msra.mxu0 0.0
          %1206 = vmatpush.msra.mxu0 %v1173
          %1207 = vmatpush.msra.mxu0 %v1172
          %1208 = vmatpush.msra.mxu0 %v1171
          %1209 = vmatpush.msra.mxu0 %v1170
          %1210 = vmatpush.msra.mxu0 %v1169
          %1211 = vmatpush.msra.mxu0 %v1168
          %1212 = vmatpush.msra.mxu0 %v1167
          %1213 = vmatpush.msra.mxu0 %v1166
          %1214 = vmatpush.msra.mxu0 %v1165
          %1215 = vmatmul.f32.gmra.mxu0 %v1176
          %v1216 = vpop.f32.mrf.mxu0
          %v1217 = vadd.f32 0.0, %v1216
          %1218 = vmatmul.f32.gmra.mxu0 %v1179
          %v1219 = vpop.f32.mrf.mxu0
          %v1220 = vadd.f32 0.0, %v1219
          %1221 = vmatmul.f32.gmra.mxu0 %v1182
          %v1222 = vpop.f32.mrf.mxu0
          %v1223 = vadd.f32 0.0, %v1222
          %1224 = vmatmul.f32.gmra.mxu0 %v1185
          %v1225 = vpop.f32.mrf.mxu0
          %v1226 = vadd.f32 0.0, %v1225
          %1227 = vmatmul.f32.gmra.mxu0 %v1188
          %v1228 = vpop.f32.mrf.mxu0
          %v1229 = vadd.f32 0.0, %v1228
          %1230 = vmatmul.f32.gmra.mxu0 %v1191
          %v1231 = vpop.f32.mrf.mxu0
          %v1232 = vadd.f32 0.0, %v1231
          %1233 = vmatmul.f32.gmra.mxu0 %v1194
          %v1234 = vpop.f32.mrf.mxu0
          %v1235 = vadd.f32 0.0, %v1234
          %1236 = vmatmul.f32.gmra.mxu0 %v1197
          %v1237 = vpop.f32.mrf.mxu0
          %v1238 = vadd.f32 0.0, %v1237
          %1239 = vdwg.mxu0
          %1240 = vst [vmem:[%s586] sm:$0xff] %v1217
          %1241 = vst [vmem:[%s586 + $0x8] sm:$0xff] %v1220
          %1242 = vst [vmem:[%s586 + $0x10] sm:$0xff] %v1223
          %1243 = vst [vmem:[%s586 + $0x18] sm:$0xff] %v1226
          %1244 = vst [vmem:[%s586 + $0x20] sm:$0xff] %v1229
          %1245 = vst [vmem:[%s586 + $0x28] sm:$0xff] %v1232
          %1246 = vst [vmem:[%s586 + $0x30] sm:$0xff] %v1235
          %1247 = vst [vmem:[%s586 + $0x38] sm:$0xff] %v1238
          %v1248 = vld [vmem:[#allocation2] sm:$0xff]
          %v1249 = vld [vmem:[#allocation2 + $0x8] sm:$0xff]
          %v1250 = vld [vmem:[#allocation2 + $0x10] sm:$0xff]
          %v1251 = vld [vmem:[#allocation2 + $0x18] sm:$0xff]
          %v1252 = vld [vmem:[#allocation2 + $0x20] sm:$0xff]
          %v1253 = vld [vmem:[#allocation2 + $0x28] sm:$0xff]
          %v1254 = vld [vmem:[#allocation2 + $0x30] sm:$0xff]
          %v1255 = vld [vmem:[#allocation2 + $0x38] sm:$0xff]
          %v1256 = vadd.f32 %v1099, %v1248
          %v1257 = vadd.f32 %v1100, %v1249
          %v1258 = vadd.f32 %v1101, %v1250
          %v1259 = vadd.f32 %v1102, %v1251
          %v1260 = vadd.f32 %v1103, %v1252
          %v1261 = vadd.f32 %v1104, %v1253
          %v1262 = vadd.f32 %v1105, %v1254
          %v1263 = vadd.f32 %v1106, %v1255
          %v1264 = vadd.f32 %v1256, %v1217
          %v1265 = vadd.f32 %v1257, %v1220
          %v1266 = vadd.f32 %v1258, %v1223
          %v1267 = vadd.f32 %v1259, %v1226
          %v1268 = vadd.f32 %v1260, %v1229
          %v1269 = vadd.f32 %v1261, %v1232
          %v1270 = vadd.f32 %v1262, %v1235
          %v1271 = vadd.f32 %v1263, %v1238
          %1272 = vst [vmem:[%s579] sm:$0xff] %v1264
          %1273 = vst [vmem:[%s579 + $0x8] sm:$0xff] %v1265
          %1274 = vst [vmem:[%s579 + $0x10] sm:$0xff] %v1266
          %1275 = vst [vmem:[%s579 + $0x18] sm:$0xff] %v1267
          %1276 = vst [vmem:[%s579 + $0x20] sm:$0xff] %v1268
          %1277 = vst [vmem:[%s579 + $0x28] sm:$0xff] %v1269
          %1278 = vst [vmem:[%s579 + $0x30] sm:$0xff] %v1270
          %1279 = vst [vmem:[%s579 + $0x38] sm:$0xff] %v1271
        $region121: #{tpu_custom_call.1} parent=92 // pred_fallthru
          _
        %s1280 = sand.u32 %s263, 1
        %s1281 = scalar_lea.sflag [#allocation5], %s1280
        %s1282 = sand.u32 %s263, 1
        %s1283 = smul.addr %s1282, 64
        %s1284 = scalar_lea.vmem [#allocation11], %s1283
        %s1285 = sand.u32 %s289, 1
        %s1286 = scalar_lea.sflag [#allocation13], %s1285
        %s1287 = sand.u32 %s289, 1
        %s1288 = smul.addr %s1287, 64
        %s1289 = scalar_lea.vmem [#allocation12], %s1288
        // Predicated region
        $region122: #{tpu_custom_call.1} parent=92 // pred_check
          %p1290 = pneg %p273
        $region123: #{tpu_custom_call.1} parent=92 // pred_check_branch
          %1292 = sbr.rel (%p1290) target = $region125
        $region124: #{tpu_custom_call.1} parent=92 // pred_region
          %s1293 = smul.u32 8, %s36
          %1295 = vsyncadd %s1281, 0
          %s1296 = smul.addr %s1293, 8
          %s1297 = scalar_lea.hbm %s9, %s1296
          %s1298 = sshll.u32 %s1284, 4
          %s1299 = int_to_ptr.vmem [resolvable:$true] %s1298
          %s1300 = sshll.u32 %s1297, 4
          %s1301 = int_to_ptr.hbm [resolvable:$true] %s1300
          %1306 = dma.vmem_to_hbm [thread:$0]  %s1299, 1024, %s1301, %s1281, 128, 128, 8
        $region125: #{tpu_custom_call.1} parent=92 // pred_fallthru
          _
        // Predicated region
        $region126: #{tpu_custom_call.1} parent=92 // pred_check
          %p1307 = pneg %p299
        $region127: #{tpu_custom_call.1} parent=92 // pred_check_branch
          %1309 = sbr.rel (%p1307) target = $region129
        $region128: #{tpu_custom_call.1} parent=92 // pred_region
          %s1310 = smul.u32 8, %s36
          %1312 = vsyncadd %s1286, 0
          %s1313 = smul.addr %s1310, 8
          %s1314 = scalar_lea.hbm %s10, %s1313
          %s1315 = sshll.u32 %s1289, 4
          %s1316 = int_to_ptr.vmem [resolvable:$true] %s1315
          %s1317 = sshll.u32 %s1314, 4
          %s1318 = int_to_ptr.hbm [resolvable:$true] %s1317
          %1323 = dma.vmem_to_hbm [thread:$0]  %s1316, 1024, %s1318, %s1286, 128, 128, 8
        $region129: #{tpu_custom_call.1} parent=92 // pred_fallthru
          _
      $region93: #{tpu_custom_call.1} parent=5 // pred_fallthru
        _
      %p1324 = scmp.le.s32.totalorder 2, %s27
      // Predicated region
      $region130: #{tpu_custom_call.1} parent=5 // pred_check
        %p1325 = pneg %p1324
      $region131: #{tpu_custom_call.1} parent=5 // pred_check_branch
        %1327 = sbr.rel (%p1325) target = $region133
      $region132: #{tpu_custom_call.1} parent=5 // pred_region
        %s1328 = ssub.s32 %s27, 2
        // Predicated region
        $region134: #{tpu_custom_call.1} parent=132 // pred_check
          %p1329 = pneg %p279
        $region135: #{tpu_custom_call.1} parent=132 // pred_check_branch
          %1331 = sbr.rel (%p1329) target = $region137
        $region136: #{tpu_custom_call.1} parent=132 // pred_region
          %s1332 = sand.u32 %s264, 1
          %s1333 = scalar_lea.sflag [#allocation5], %s1332
          %s1334 = sand.u32 %s264, 1
          %s1335 = smul.addr %s1334, 64
          %s1336 = scalar_lea.vmem [#allocation11], %s1335
          %1338 = dma.done %s1333, 1024
        $region137: #{tpu_custom_call.1} parent=132 // pred_fallthru
          _
        // Predicated region
        $region138: #{tpu_custom_call.1} parent=132 // pred_check
          %p1339 = pneg %p305
        $region139: #{tpu_custom_call.1} parent=132 // pred_check_branch
          %1341 = sbr.rel (%p1339) target = $region141
        $region140: #{tpu_custom_call.1} parent=132 // pred_region
          %s1342 = sand.u32 %s290, 1
          %s1343 = scalar_lea.sflag [#allocation13], %s1342
          %s1344 = sand.u32 %s290, 1
          %s1345 = smul.addr %s1344, 64
          %s1346 = scalar_lea.vmem [#allocation12], %s1345
          %1348 = dma.done %s1343, 1024
        $region141: #{tpu_custom_call.1} parent=132 // pred_fallthru
          _
      $region133: #{tpu_custom_call.1} parent=5 // pred_fallthru
        _
    $region6: #{tpu_custom_call.1} parent=1 // loop_footer
      %s31 = sadd.s32 1, %s27
    $region7: #{tpu_custom_call.1} parent=1 // loop_footer_branch
      %26 = sbr.rel target = $region3
    $region8: #{tpu_custom_call.1} parent=1 // loop_exit
      _
    %1349 = vsyncpa [#allocation4], 1
    %s1350 = scalar_lea.sflag [#allocation4], 1
    %1351 = vsyncpa %s1350, 1
    %1352 = vsyncpa [#allocation8], 1
    %1353 = vsyncpa [#allocation5], 1
    %s1354 = scalar_lea.sflag [#allocation5], 1
    %1355 = vsyncpa %s1354, 1
    %1356 = vsyncpa [#allocation13], 1
    %s1357 = scalar_lea.sflag [#allocation13], 1
    %1358 = vsyncpa %s1357, 1

</llo_original>
